<compile_context>
chip_gen: v7x
topology: tpu7x:2x2x1
jax: 0.10.0
libtpu: 0.0.40
codegen_flags: <defaults>
</compile_context>

<pallas_src>
import numpy as np

import jax
import jax.numpy as jnp
from jax.experimental import pallas as pl
from jax.experimental.pallas import tpu as pltpu


def _round_up(x, m):
    return (x + m - 1) // m * m


def _pad2(a, rows, cols):
    return jnp.pad(a, ((0, rows - a.shape[0]), (0, cols - a.shape[1])))


# ----------------------------------------------------------------------------
# Static-graph, host-side preprocessing (vectorized numpy, run ONCE per graph).
# Sorts edges by destination, pads each node-tile's edge segment to a multiple
# of `te`, and builds the CSR edge-tile table that is scalar-prefetched to SMEM.
# ----------------------------------------------------------------------------
def build_graph_tiles(dst, num_nodes, *, tn=128, te=256):
    dst_np = np.asarray(dst, dtype=np.int64)
    E = int(dst_np.shape[0])
    n_pad = _round_up(num_nodes, tn)
    n_node_tiles = n_pad // tn

    order = np.argsort(dst_np, kind="stable")
    dst_sorted = dst_np[order]
    tile_of_edge = dst_sorted // tn                                     # [E]

    counts = np.bincount(tile_of_edge, minlength=n_node_tiles)[:n_node_tiles]
    pcounts = ((counts + te - 1) // te) * te                            # per-tile padded length
    start = np.concatenate([[0], np.cumsum(counts)])[:-1]
    pstart = np.concatenate([[0], np.cumsum(pcounts)])[:-1]
    e_pad = int(max(int(pcounts.sum()), te))
    n_edge_tiles = e_pad // te

    # position of each sorted edge inside the padded, per-node-tile-contiguous slab
    padded_pos = (pstart[tile_of_edge] + (np.arange(E) - start[tile_of_edge])).astype(np.int32)

    dst_padded = np.full((e_pad,), -1, np.int32)                        # -1 sentinel: matches no node
    dst_padded[padded_pos] = dst_sorted

    base = (pstart // te).astype(np.int32)
    cnt = (pcounts // te).astype(np.int32)
    k_max = int(max(1, int(cnt.max())))
    K = 1 << (k_max - 1).bit_length()                                   # bucketize -> fewer recompiles

    j_idx = np.arange(K)[None, :]
    tab = base[:, None] + np.minimum(j_idx, np.maximum(cnt[:, None] - 1, 0))
    tab = np.clip(tab, 0, n_edge_tiles - 1).astype(np.int32)

    deg = np.bincount(dst_np, minlength=n_pad)[:n_pad].astype(np.float32)

    return dict(
        tn=tn, te=te, n_pad=n_pad, e_pad=e_pad, K=K,
        n_node_tiles=n_node_tiles, n_edge_tiles=n_edge_tiles,
        order=jnp.asarray(order, jnp.int32),
        padded_pos=jnp.asarray(padded_pos, jnp.int32),
        dst_tiles=jnp.asarray(dst_padded.reshape(n_edge_tiles, 1, te), jnp.int32),
        deg=jnp.asarray(deg.reshape(n_pad, 1), jnp.float32),
        tab=jnp.asarray(tab, jnp.int32),
        cnt=jnp.asarray(cnt, jnp.int32),
    )


# ----------------------------------------------------------------------------
# Wrapper: device-side glue (embedding lookup, src gather, padded slab) + one
# fused Pallas kernel for both KernelMLPs and the segment-sum aggregation.
# ----------------------------------------------------------------------------
def wls_mlp_layer_edge(features, edge_type, src, params, num_nodes, graph):
    f32, bf16 = jnp.float32, jnp.bfloat16
    N, in_dim = features.shape
    tn, te = graph["tn"], graph["te"]
    n_pad, e_pad, K = graph["n_pad"], graph["e_pad"], graph["K"]
    n_node_tiles = graph["n_node_tiles"]

    out_half = params["w2_self"].shape[1]
    hid_self = params["w1_self"].shape[1]
    hid_edge = params["w1_edge"].shape[1]
    xe_in = 2 * in_dim

    # lane-friendly padded feature dims (multiples of 128)
    in_p = _round_up(in_dim, 128)
    xe_p = _round_up(xe_in, 128)
    hs_p = _round_up(hid_self, 128)
    he_p = _round_up(hid_edge, 128)
    oh_p = _round_up(out_half, 128)

    # ---- device glue: gathers, dst-sorted + per-node-tile padded edge slab ----
    # TODO(synk): on v5e (mem-bound) this xe materialization could be fused into
    #             the kernel via a scalar-prefetched src-index row gather.
    e_feat = jnp.take(params["e_embedding"], edge_type, axis=0)          # [E, in_dim]
    h_src = jnp.take(features, src, axis=0)                              # [E, in_dim]
    xe = jnp.concatenate([e_feat, h_src], axis=-1).astype(bf16)          # [E, 2*in_dim]
    xe = jnp.take(xe, graph["order"], axis=0)                            # dst-sorted
    xe = jnp.pad(xe, ((0, 0), (0, xe_p - xe_in)))
    xe_pad = jnp.zeros((e_pad, xe_p), bf16).at[graph["padded_pos"]].set(xe)

    x_pad = jnp.zeros((n_pad, in_p), bf16).at[:N, :in_dim].set(features.astype(bf16))

    w1s = _pad2(params["w1_self"].astype(bf16), in_p, hs_p)
    b1s = _pad2(params["b1_self"].astype(f32), 1, hs_p)
    w2s = _pad2(params["w2_self"].astype(bf16), hs_p, oh_p)
    b2s = _pad2(params["b2_self"].astype(f32), 1, oh_p)
    w1e = _pad2(params["w1_edge"].astype(bf16), xe_p, he_p)
    b1e = _pad2(params["b1_edge"].astype(f32), 1, he_p)
    w2e = _pad2(params["w2_edge"].astype(bf16), he_p, oh_p)
    b2e = _pad2(params["b2_edge"].astype(f32), 1, oh_p)

    # ---- the fused kernel -----------------------------------------------------
    def kernel(tab_ref, cnt_ref,
               x_ref, xe_ref, dst_ref, deg_ref,
               w1s_ref, b1s_ref, w2s_ref, b2s_ref,
               w1e_ref, b1e_ref, w2e_ref, b2e_ref,
               oself_ref, oagg_ref,
               aggh_ref):
        i = pl.program_id(0)      # node tile (parallel -> 2 TCs on v7x)
        j = pl.program_id(1)      # edge-tile step within this node tile's CSR range

        # init hidden accumulator + run the self MLP once per node tile
        @pl.when(j == 0)
        def _init_and_self():
            aggh_ref[...] = jnp.zeros_like(aggh_ref)
            h = jnp.dot(x_ref[...], w1s_ref[...],
                        preferred_element_type=jnp.float32)
            h = jnp.maximum(h + b1s_ref[...], 0.0)
            s = jnp.dot(h.astype(w2s_ref.dtype), w2s_ref[...],
                        preferred_element_type=jnp.float32) + b2s_ref[...]
            oself_ref[...] = s.astype(oself_ref.dtype)

        # edge MLP layer-1 + tile-local bf16 one-hot scatter-add of the hidden
        # activations (skipped past this node tile's CSR range)
        @pl.when(j < cnt_ref[i])
        def _edge_tile():
            he = jnp.dot(xe_ref[...], w1e_ref[...],
                         preferred_element_type=jnp.float32)
            he = jnp.maximum(he + b1e_ref[...], 0.0).astype(jnp.bfloat16)
            local = jax.lax.broadcasted_iota(jnp.int32, (tn, te), 0)      # [tn, te]
            onehot = (local == (dst_ref[0] - i * tn)).astype(jnp.bfloat16)
            aggh_ref[...] += jnp.dot(onehot, he,
                                     preferred_element_type=jnp.float32)

        # hoisted w2_edge projection + degree-weighted bias, once per node tile
        @pl.when(j == pl.num_programs(1) - 1)
        def _finalize():
            agg = jnp.dot(aggh_ref[...].astype(w2e_ref.dtype), w2e_ref[...],
                          preferred_element_type=jnp.float32)
            agg = agg + deg_ref[...] * b2e_ref[...]
            oagg_ref[...] = agg.astype(oagg_ref.dtype)

    grid_spec = pltpu.PrefetchScalarGridSpec(
        num_scalar_prefetch=2,
        grid=(n_node_tiles, K),
        in_specs=[
            pl.BlockSpec((tn, in_p), lambda i, j, tab, cnt: (i, 0)),            # x
            pl.BlockSpec((te, xe_p), lambda i, j, tab, cnt: (tab[i, j], 0)),    # xe (sorted+padded)
            pl.BlockSpec((1, 1, te), lambda i, j, tab, cnt: (tab[i, j], 0, 0)), # dst tiles
            pl.BlockSpec((tn, 1), lambda i, j, tab, cnt: (i, 0)),               # degree
            pl.BlockSpec((in_p, hs_p), lambda i, j, tab, cnt: (0, 0)),          # w1_self
            pl.BlockSpec((1, hs_p), lambda i, j, tab, cnt: (0, 0)),             # b1_self
            pl.BlockSpec((hs_p, oh_p), lambda i, j, tab, cnt: (0, 0)),          # w2_self
            pl.BlockSpec((1, oh_p), lambda i, j, tab, cnt: (0, 0)),             # b2_self
            pl.BlockSpec((xe_p, he_p), lambda i, j, tab, cnt: (0, 0)),          # w1_edge
            pl.BlockSpec((1, he_p), lambda i, j, tab, cnt: (0, 0)),             # b1_edge
            pl.BlockSpec((he_p, oh_p), lambda i, j, tab, cnt: (0, 0)),          # w2_edge
            pl.BlockSpec((1, oh_p), lambda i, j, tab, cnt: (0, 0)),             # b2_edge
        ],
        out_specs=(
            pl.BlockSpec((tn, oh_p), lambda i, j, tab, cnt: (i, 0)),            # self path
            pl.BlockSpec((tn, oh_p), lambda i, j, tab, cnt: (i, 0)),            # aggregation
        ),
        scratch_shapes=[pltpu.VMEM((tn, he_p), jnp.float32)],                   # hidden accumulator
    )

    mlp_flops = (2 * n_pad * (in_p * hs_p + hs_p * oh_p)    # self MLP
                 + 2 * e_pad * xe_p * he_p                  # edge layer 1
                 + 2 * n_pad * he_p * oh_p)                 # hoisted edge layer 2
    scatter_flops = 2 * e_pad * tn * he_p
    bytes_accessed = (x_pad.size * 2 + xe_pad.size * 2
                      + graph["dst_tiles"].size * 4 + graph["deg"].size * 4
                      + sum(int(a.size) * a.dtype.itemsize
                            for a in (w1s, b1s, w2s, b2s, w1e, b1e, w2e, b2e))
                      + 2 * n_pad * oh_p * 2)
    cost = pl.CostEstimate(flops=int(mlp_flops + scatter_flops),
                           transcendentals=0,
                           bytes_accessed=int(bytes_accessed))

    o_self, o_agg = pl.pallas_call(
        kernel,
        grid_spec=grid_spec,
        out_shape=(jax.ShapeDtypeStruct((n_pad, oh_p), bf16),
                   jax.ShapeDtypeStruct((n_pad, oh_p), bf16)),
        compiler_params=pltpu.CompilerParams(
            dimension_semantics=("parallel", "arbitrary"),
            vmem_limit_bytes=32 * 1024 * 1024),
        cost_estimate=cost,
    )(graph["tab"], graph["cnt"],
      x_pad, xe_pad, graph["dst_tiles"], graph["deg"],
      w1s, b1s, w2s, b2s, w1e, b1e, w2e, b2e)

    # glue: drop padding, concat [self, aggregated] -> [N, out_dim]
    return jnp.concatenate([o_self[:N, :out_half], o_agg[:N, :out_half]], axis=-1)


# ----------------------------------------------------------------------------
# Deterministic parameter construction (synthetic, no checkpoints).
# Weights stored as [in_features, out_features] (PyTorch nn.Linear pre-transposed).
# ----------------------------------------------------------------------------
def make_params(key, in_dim, out_dim, scale_hidden, num_edge_types):
    ks = jax.random.split(key, 9)
    out_half = out_dim // 2
    h_self = in_dim * scale_hidden
    h_edge = (in_dim * 2) * scale_hidden

    def lin_w(k, din, dout):
        return (jax.random.normal(k, (din, dout), jnp.float32)
                / jnp.sqrt(din)).astype(jnp.bfloat16)

    def lin_b(k, dout):
        return (0.01 * jax.random.normal(k, (1, dout), jnp.float32)).astype(jnp.float32)

    return {
        "e_embedding": jax.random.normal(ks[0], (num_edge_types, in_dim),
                                         jnp.float32).astype(jnp.bfloat16),
        # transform_self : KernelMLP(in_dim, out_dim//2)
        "w1_self": lin_w(ks[1], in_dim, h_self),
        "b1_self": lin_b(ks[2], h_self),
        "w2_self": lin_w(ks[3], h_self, out_half),
        "b2_self": lin_b(ks[4], out_half),
        # transform (edge) : KernelMLP(in_dim*2, out_dim//2)
        "w1_edge": lin_w(ks[5], in_dim * 2, h_edge),
        "b1_edge": lin_b(ks[6], h_edge),
        "w2_edge": lin_w(ks[7], h_edge, out_half),
        "b2_edge": lin_b(ks[8], out_half),
    }


# ----------------------------------------------------------------------------
# Pure-JAX reference of the same forward pass (bf16 inputs, f32 accumulation).
# ----------------------------------------------------------------------------
def reference(features, edge_type, src, dst, params, num_nodes):
    f32, bf16 = jnp.float32, jnp.bfloat16
    e_feat = params["e_embedding"][edge_type]
    xe = jnp.concatenate([e_feat, features[src]], axis=-1)
    he = jnp.maximum(jnp.dot(xe, params["w1_edge"], preferred_element_type=f32)
                     + params["b1_edge"], 0.0)
    msg = jnp.dot(he.astype(bf16), params["w2_edge"],
                  preferred_element_type=f32) + params["b2_edge"]
    agg = jax.ops.segment_sum(msg, dst, num_segments=num_nodes)
    hs = jnp.maximum(jnp.dot(features, params["w1_self"], preferred_element_type=f32)
                     + params["b1_self"], 0.0)
    self_out = jnp.dot(hs.astype(bf16), params["w2_self"],
                       preferred_element_type=f32) + params["b2_self"]
    return jnp.concatenate([self_out, agg], axis=-1)


if __name__ == "__main__":
    # Small synthetic graph consistent with the module's forward.
    N = 256               # nodes  -> 2 node tiles of 128 (>= 2 tiles feeds both v7x cores)
    E = 1024              # edges
    in_dim = 32
    out_dim = 32          # output [N, out_dim] = concat(out_dim//2, out_dim//2)
    scale_hidden = 2
    num_edge_types = 4

    key = jax.random.PRNGKey(0)
    k_feat, k_et, k_src, k_dst, k_params = jax.random.split(key, 5)

    features = jax.random.normal(k_feat, (N, in_dim), jnp.float32).astype(jnp.bfloat16)
    edge_type = jax.random.randint(k_et, (E,), 0, num_edge_types)
    src = jax.random.randint(k_src, (E,), 0, N)
    dst = jax.random.randint(k_dst, (E,), 0, N)

    params = make_params(k_params, in_dim, out_dim, scale_hidden, num_edge_types)

    # Static-graph preprocessing: run ONCE per graph on the host (vectorized numpy).
    graph = build_graph_tiles(np.asarray(jax.device_get(dst)), N, tn=128, te=256)

    out = jax.block_until_ready(
        wls_mlp_layer_edge(features, edge_type, src, params, N, graph))
    ref = jax.block_until_ready(reference(features, edge_type, src, dst, params, N))

    assert out.shape == (N, out_dim)
    out_f32 = out.astype(jnp.float32)
    err = float(jnp.max(jnp.abs(out_f32 - ref)))
    # bf16 outputs + bf16 MXU (f32 accumulation) -> compare at bf16-level tolerance.
    assert jnp.allclose(out_f32, ref, atol=2e-2, rtol=2e-2), \
        f"mismatch vs reference, max abs err {err}"

    print("KERNEL_OK")
</pallas_src>

<mosaic_0001>
module attributes {stable_mosaic.version = 11 : i64} {
  func.func @kernel(%arg0: i32, %arg1: i32, %arg2: memref<2x4xi32, #tpu.memory_space<smem>>, %arg3: memref<2xi32, #tpu.memory_space<smem>>, %arg4: memref<128x128xbf16, #tpu.memory_space<vmem>>, %arg5: memref<256x128xbf16, #tpu.memory_space<vmem>>, %arg6: memref<1x1x256xi32, #tpu.memory_space<vmem>>, %arg7: memref<128x1xf32, #tpu.memory_space<vmem>>, %arg8: memref<128x128xbf16, #tpu.memory_space<vmem>>, %arg9: memref<1x128xf32, #tpu.memory_space<vmem>>, %arg10: memref<128x128xbf16, #tpu.memory_space<vmem>>, %arg11: memref<1x128xf32, #tpu.memory_space<vmem>>, %arg12: memref<128x128xbf16, #tpu.memory_space<vmem>>, %arg13: memref<1x128xf32, #tpu.memory_space<vmem>>, %arg14: memref<128x128xbf16, #tpu.memory_space<vmem>>, %arg15: memref<1x128xf32, #tpu.memory_space<vmem>>, %arg16: memref<128x128xbf16, #tpu.memory_space<vmem>>, %arg17: memref<128x128xbf16, #tpu.memory_space<vmem>>, %arg18: memref<128x128xf32, #tpu.memory_space<vmem>>) attributes {dimension_semantics = [#tpu.dimension_semantics<parallel>, #tpu.dimension_semantics<arbitrary>], iteration_bounds = array<i64: 2, 4>, scalar_prefetch = 2 : i64, scratch_operands = 1 : i64, tpu.core_type = #tpu.core_type<tc>, window_params = [{transform_indices = @transform_0, window_bounds = array<i64: 128, 128>}, {transform_indices = @transform_1, window_bounds = array<i64: 256, 128>}, {transform_indices = @transform_2, window_bounds = array<i64: 1, 1, 256>}, {transform_indices = @transform_3, window_bounds = array<i64: 128, 1>}, {pipeline_mode = #tpu.pipeline_mode<synchronous>, transform_indices = @transform_4, window_bounds = array<i64: 128, 128>}, {pipeline_mode = #tpu.pipeline_mode<synchronous>, transform_indices = @transform_5, window_bounds = array<i64: 1, 128>}, {pipeline_mode = #tpu.pipeline_mode<synchronous>, transform_indices = @transform_6, window_bounds = array<i64: 128, 128>}, {pipeline_mode = #tpu.pipeline_mode<synchronous>, transform_indices = @transform_7, window_bounds = array<i64: 1, 128>}, {pipeline_mode = #tpu.pipeline_mode<synchronous>, transform_indices = @transform_8, window_bounds = array<i64: 128, 128>}, {pipeline_mode = #tpu.pipeline_mode<synchronous>, transform_indices = @transform_9, window_bounds = array<i64: 1, 128>}, {pipeline_mode = #tpu.pipeline_mode<synchronous>, transform_indices = @transform_10, window_bounds = array<i64: 128, 128>}, {pipeline_mode = #tpu.pipeline_mode<synchronous>, transform_indices = @transform_11, window_bounds = array<i64: 1, 128>}, {transform_indices = @transform_12, window_bounds = array<i64: 128, 128>}, {transform_indices = @transform_13, window_bounds = array<i64: 128, 128>}]} {
    %c0_i32 = arith.constant 0 : i32
    %0 = arith.cmpi eq, %arg1, %c0_i32 : i32
    %1 = arith.extui %0 : i1 to i32
    %c0_i32_0 = arith.constant 0 : i32
    %2 = arith.cmpi ne, %1, %c0_i32_0 : i32
    scf.if %2 {
      %cst = arith.constant 0.000000e+00 : f32
      %11 = vector.broadcast %cst : f32 to vector<128x128xf32>
      %c0 = arith.constant 0 : index
      %c0_3 = arith.constant 0 : index
      %12 = vector.load %arg18[%c0, %c0_3] : memref<128x128xf32, #tpu.memory_space<vmem>>, vector<128x128xf32>
      tpu.vector_store %arg18[%c0, %c0_3], %11 {strides = array<i32>} : memref<128x128xf32, #tpu.memory_space<vmem>>, vector<128x128xf32>,
      %c0_4 = arith.constant 0 : index
      %c0_5 = arith.constant 0 : index
      %13 = vector.load %arg4[%c0_4, %c0_5] : memref<128x128xbf16, #tpu.memory_space<vmem>>, vector<128x128xbf16>
      %c0_6 = arith.constant 0 : index
      %c0_7 = arith.constant 0 : index
      %14 = vector.load %arg8[%c0_6, %c0_7] : memref<128x128xbf16, #tpu.memory_space<vmem>>, vector<128x128xbf16>
      %cst_8 = arith.constant dense<0.000000e+00> : vector<128x128xf32>
      %15 = tpu.matmul %13, %14, %cst_8 {dimension_numbers = #tpu.dot_dimension_numbers<[1], [0], [0], [1], [0, 0, 1, 1], [], []>} : vector<128x128xbf16>, vector<128x128xbf16>, vector<128x128xf32> -> vector<128x128xf32>
      %c0_9 = arith.constant 0 : index
      %c0_10 = arith.constant 0 : index
      %16 = vector.load %arg9[%c0_9, %c0_10] : memref<1x128xf32, #tpu.memory_space<vmem>>, vector<1x128xf32>
      %17 = vector.broadcast %16 : vector<1x128xf32> to vector<128x128xf32>
      %18 = arith.addf %15, %17 : vector<128x128xf32>
      %cst_11 = arith.constant 0.000000e+00 : f32
      %19 = vector.broadcast %cst_11 : f32 to vector<128x128xf32>
      %20 = arith.maximumf %18, %19 : vector<128x128xf32>
      %21 = arith.truncf %20 : vector<128x128xf32> to vector<128x128xbf16>
      %c0_12 = arith.constant 0 : index
      %c0_13 = arith.constant 0 : index
      %22 = vector.load %arg10[%c0_12, %c0_13] : memref<128x128xbf16, #tpu.memory_space<vmem>>, vector<128x128xbf16>
      %cst_14 = arith.constant dense<0.000000e+00> : vector<128x128xf32>
      %23 = tpu.matmul %21, %22, %cst_14 {dimension_numbers = #tpu.dot_dimension_numbers<[1], [0], [0], [1], [0, 0, 1, 1], [], []>} : vector<128x128xbf16>, vector<128x128xbf16>, vector<128x128xf32> -> vector<128x128xf32>
      %c0_15 = arith.constant 0 : index
      %c0_16 = arith.constant 0 : index
      %24 = vector.load %arg11[%c0_15, %c0_16] : memref<1x128xf32, #tpu.memory_space<vmem>>, vector<1x128xf32>
      %25 = vector.broadcast %24 : vector<1x128xf32> to vector<128x128xf32>
      %26 = arith.addf %23, %25 : vector<128x128xf32>
      %27 = arith.truncf %26 : vector<128x128xf32> to vector<128x128xbf16>
      %c0_17 = arith.constant 0 : index
      %c0_18 = arith.constant 0 : index
      %28 = vector.load %arg16[%c0_17, %c0_18] : memref<128x128xbf16, #tpu.memory_space<vmem>>, vector<128x128xbf16>
      tpu.vector_store %arg16[%c0_17, %c0_18], %27 {strides = array<i32>} : memref<128x128xbf16, #tpu.memory_space<vmem>>, vector<128x128xbf16>,
    } else {
    }
    %3 = arith.index_cast %arg0 : i32 to index
    %4 = memref.load %arg3[%3] : memref<2xi32, #tpu.memory_space<smem>>
    %5 = arith.cmpi slt, %arg1, %4 : i32
    %6 = arith.extui %5 : i1 to i32
    %c0_i32_1 = arith.constant 0 : i32
    %7 = arith.cmpi ne, %6, %c0_i32_1 : i32
    scf.if %7 {
      %c0 = arith.constant 0 : index
      %c0_3 = arith.constant 0 : index
      %11 = vector.load %arg5[%c0, %c0_3] : memref<256x128xbf16, #tpu.memory_space<vmem>>, vector<256x128xbf16>
      %c0_4 = arith.constant 0 : index
      %c0_5 = arith.constant 0 : index
      %12 = vector.load %arg12[%c0_4, %c0_5] : memref<128x128xbf16, #tpu.memory_space<vmem>>, vector<128x128xbf16>
      %cst = arith.constant dense<0.000000e+00> : vector<256x128xf32>
      %13 = tpu.matmul %11, %12, %cst {dimension_numbers = #tpu.dot_dimension_numbers<[1], [0], [0], [1], [0, 0, 1, 1], [], []>} : vector<256x128xbf16>, vector<128x128xbf16>, vector<256x128xf32> -> vector<256x128xf32>
      %c0_6 = arith.constant 0 : index
      %c0_7 = arith.constant 0 : index
      %14 = vector.load %arg13[%c0_6, %c0_7] : memref<1x128xf32, #tpu.memory_space<vmem>>, vector<1x128xf32>
      %15 = vector.broadcast %14 : vector<1x128xf32> to vector<256x128xf32>
      %16 = arith.addf %13, %15 : vector<256x128xf32>
      %cst_8 = arith.constant 0.000000e+00 : f32
      %17 = vector.broadcast %cst_8 : f32 to vector<256x128xf32>
      %18 = arith.maximumf %16, %17 : vector<256x128xf32>
      %19 = arith.truncf %18 : vector<256x128xf32> to vector<256x128xbf16>
      %20 = tpu.iota {dimensions = array<i32: 0>} : vector<128x256xi32>
      %c0_9 = arith.constant 0 : index
      %c0_10 = arith.constant 0 : index
      %c0_11 = arith.constant 0 : index
      %21 = vector.load %arg6[%c0_9, %c0_10, %c0_11] : memref<1x1x256xi32, #tpu.memory_space<vmem>>, vector<1x1x256xi32>
      %22 = vector.shape_cast %21 : vector<1x1x256xi32> to vector<1x256xi32>
      %c128_i32 = arith.constant 128 : i32
      %23 = arith.muli %arg0, %c128_i32 : i32
      %24 = vector.broadcast %23 : i32 to vector<1x256xi32>
      %25 = arith.subi %22, %24 : vector<1x256xi32>
      %26 = vector.broadcast %25 : vector<1x256xi32> to vector<128x256xi32>
      %27 = arith.cmpi eq, %20, %26 : vector<128x256xi32>
      %28 = arith.extui %27 : vector<128x256xi1> to vector<128x256xi32>
      %29 = arith.sitofp %28 : vector<128x256xi32> to vector<128x256xf32>
      %30 = arith.truncf %29 : vector<128x256xf32> to vector<128x256xbf16>
      %c0_12 = arith.constant 0 : index
      %c0_13 = arith.constant 0 : index
      %31 = vector.load %arg18[%c0_12, %c0_13] : memref<128x128xf32, #tpu.memory_space<vmem>>, vector<128x128xf32>
      %cst_14 = arith.constant dense<0.000000e+00> : vector<128x128xf32>
      %32 = tpu.matmul %30, %19, %cst_14 {dimension_numbers = #tpu.dot_dimension_numbers<[1], [0], [0], [1], [0, 0, 1, 1], [], []>} : vector<128x256xbf16>, vector<256x128xbf16>, vector<128x128xf32> -> vector<128x128xf32>
      %33 = arith.addf %31, %32 : vector<128x128xf32>
      %c0_15 = arith.constant 0 : index
      %c0_16 = arith.constant 0 : index
      %34 = vector.load %arg18[%c0_15, %c0_16] : memref<128x128xf32, #tpu.memory_space<vmem>>, vector<128x128xf32>
      tpu.vector_store %arg18[%c0_15, %c0_16], %33 {strides = array<i32>} : memref<128x128xf32, #tpu.memory_space<vmem>>, vector<128x128xf32>,
    } else {
    }
    %c3_i32 = arith.constant 3 : i32
    %8 = arith.cmpi eq, %arg1, %c3_i32 : i32
    %9 = arith.extui %8 : i1 to i32
    %c0_i32_2 = arith.constant 0 : i32
    %10 = arith.cmpi ne, %9, %c0_i32_2 : i32
    scf.if %10 {
      %c0 = arith.constant 0 : index
      %c0_3 = arith.constant 0 : index
      %11 = vector.load %arg18[%c0, %c0_3] : memref<128x128xf32, #tpu.memory_space<vmem>>, vector<128x128xf32>
      %12 = arith.truncf %11 : vector<128x128xf32> to vector<128x128xbf16>
      %c0_4 = arith.constant 0 : index
      %c0_5 = arith.constant 0 : index
      %13 = vector.load %arg14[%c0_4, %c0_5] : memref<128x128xbf16, #tpu.memory_space<vmem>>, vector<128x128xbf16>
      %cst = arith.constant dense<0.000000e+00> : vector<128x128xf32>
      %14 = tpu.matmul %12, %13, %cst {dimension_numbers = #tpu.dot_dimension_numbers<[1], [0], [0], [1], [0, 0, 1, 1], [], []>} : vector<128x128xbf16>, vector<128x128xbf16>, vector<128x128xf32> -> vector<128x128xf32>
      %c0_6 = arith.constant 0 : index
      %c0_7 = arith.constant 0 : index
      %15 = vector.load %arg7[%c0_6, %c0_7] : memref<128x1xf32, #tpu.memory_space<vmem>>, vector<128x1xf32>
      %c0_8 = arith.constant 0 : index
      %c0_9 = arith.constant 0 : index
      %16 = vector.load %arg15[%c0_8, %c0_9] : memref<1x128xf32, #tpu.memory_space<vmem>>, vector<1x128xf32>
      %17 = vector.broadcast %15 : vector<128x1xf32> to vector<128x128xf32>
      %18 = vector.broadcast %16 : vector<1x128xf32> to vector<128x128xf32>
      %19 = arith.mulf %17, %18 : vector<128x128xf32>
      %20 = arith.addf %14, %19 : vector<128x128xf32>
      %21 = arith.truncf %20 : vector<128x128xf32> to vector<128x128xbf16>
      %c0_10 = arith.constant 0 : index
      %c0_11 = arith.constant 0 : index
      %22 = vector.load %arg17[%c0_10, %c0_11] : memref<128x128xbf16, #tpu.memory_space<vmem>>, vector<128x128xbf16>
      tpu.vector_store %arg17[%c0_10, %c0_11], %21 {strides = array<i32>} : memref<128x128xbf16, #tpu.memory_space<vmem>>, vector<128x128xbf16>,
    } else {
    }
    return
  }
  func.func @transform_0(%arg0: i32, %arg1: i32, %arg2: memref<2x4xi32, #tpu.memory_space<smem>>, %arg3: memref<2xi32, #tpu.memory_space<smem>>) -> (i32, i32) {
    %c0_i32 = arith.constant 0 : i32
    %c0_i32_0 = arith.constant 0 : i32
    return %arg0, %c0_i32 : i32, i32
  }
  func.func @transform_1(%arg0: i32, %arg1: i32, %arg2: memref<2x4xi32, #tpu.memory_space<smem>>, %arg3: memref<2xi32, #tpu.memory_space<smem>>) -> (i32, i32) {
    %0 = arith.index_cast %arg0 : i32 to index
    %1 = arith.index_cast %arg1 : i32 to index
    %2 = memref.load %arg2[%0, %1] : memref<2x4xi32, #tpu.memory_space<smem>>
    %c0_i32 = arith.constant 0 : i32
    %c0_i32_0 = arith.constant 0 : i32
    return %2, %c0_i32 : i32, i32
  }
  func.func @transform_2(%arg0: i32, %arg1: i32, %arg2: memref<2x4xi32, #tpu.memory_space<smem>>, %arg3: memref<2xi32, #tpu.memory_space<smem>>) -> (i32, i32, i32) {
    %0 = arith.index_cast %arg0 : i32 to index
    %1 = arith.index_cast %arg1 : i32 to index
    %2 = memref.load %arg2[%0, %1] : memref<2x4xi32, #tpu.memory_space<smem>>
    %c0_i32 = arith.constant 0 : i32
    %c0_i32_0 = arith.constant 0 : i32
    %c0_i32_1 = arith.constant 0 : i32
    return %2, %c0_i32, %c0_i32_0 : i32, i32, i32
  }
  func.func @transform_3(%arg0: i32, %arg1: i32, %arg2: memref<2x4xi32, #tpu.memory_space<smem>>, %arg3: memref<2xi32, #tpu.memory_space<smem>>) -> (i32, i32) {
    %c0_i32 = arith.constant 0 : i32
    %c0_i32_0 = arith.constant 0 : i32
    return %arg0, %c0_i32 : i32, i32
  }
  func.func @transform_4(%arg0: i32, %arg1: i32, %arg2: memref<2x4xi32, #tpu.memory_space<smem>>, %arg3: memref<2xi32, #tpu.memory_space<smem>>) -> (i32, i32) {
    %c0_i32 = arith.constant 0 : i32
    %c0_i32_0 = arith.constant 0 : i32
    %c0_i32_1 = arith.constant 0 : i32
    return %c0_i32, %c0_i32_0 : i32, i32
  }
  func.func @transform_5(%arg0: i32, %arg1: i32, %arg2: memref<2x4xi32, #tpu.memory_space<smem>>, %arg3: memref<2xi32, #tpu.memory_space<smem>>) -> (i32, i32) {
    %c0_i32 = arith.constant 0 : i32
    %c0_i32_0 = arith.constant 0 : i32
    %c0_i32_1 = arith.constant 0 : i32
    return %c0_i32, %c0_i32_0 : i32, i32
  }
  func.func @transform_6(%arg0: i32, %arg1: i32, %arg2: memref<2x4xi32, #tpu.memory_space<smem>>, %arg3: memref<2xi32, #tpu.memory_space<smem>>) -> (i32, i32) {
    %c0_i32 = arith.constant 0 : i32
    %c0_i32_0 = arith.constant 0 : i32
    %c0_i32_1 = arith.constant 0 : i32
    return %c0_i32, %c0_i32_0 : i32, i32
  }
  func.func @transform_7(%arg0: i32, %arg1: i32, %arg2: memref<2x4xi32, #tpu.memory_space<smem>>, %arg3: memref<2xi32, #tpu.memory_space<smem>>) -> (i32, i32) {
    %c0_i32 = arith.constant 0 : i32
    %c0_i32_0 = arith.constant 0 : i32
    %c0_i32_1 = arith.constant 0 : i32
    return %c0_i32, %c0_i32_0 : i32, i32
  }
  func.func @transform_8(%arg0: i32, %arg1: i32, %arg2: memref<2x4xi32, #tpu.memory_space<smem>>, %arg3: memref<2xi32, #tpu.memory_space<smem>>) -> (i32, i32) {
    %c0_i32 = arith.constant 0 : i32
    %c0_i32_0 = arith.constant 0 : i32
    %c0_i32_1 = arith.constant 0 : i32
    return %c0_i32, %c0_i32_0 : i32, i32
  }
  func.func @transform_9(%arg0: i32, %arg1: i32, %arg2: memref<2x4xi32, #tpu.memory_space<smem>>, %arg3: memref<2xi32, #tpu.memory_space<smem>>) -> (i32, i32) {
    %c0_i32 = arith.constant 0 : i32
    %c0_i32_0 = arith.constant 0 : i32
    %c0_i32_1 = arith.constant 0 : i32
    return %c0_i32, %c0_i32_0 : i32, i32
  }
  func.func @transform_10(%arg0: i32, %arg1: i32, %arg2: memref<2x4xi32, #tpu.memory_space<smem>>, %arg3: memref<2xi32, #tpu.memory_space<smem>>) -> (i32, i32) {
    %c0_i32 = arith.constant 0 : i32
    %c0_i32_0 = arith.constant 0 : i32
    %c0_i32_1 = arith.constant 0 : i32
    return %c0_i32, %c0_i32_0 : i32, i32
  }
  func.func @transform_11(%arg0: i32, %arg1: i32, %arg2: memref<2x4xi32, #tpu.memory_space<smem>>, %arg3: memref<2xi32, #tpu.memory_space<smem>>) -> (i32, i32) {
    %c0_i32 = arith.constant 0 : i32
    %c0_i32_0 = arith.constant 0 : i32
    %c0_i32_1 = arith.constant 0 : i32
    return %c0_i32, %c0_i32_0 : i32, i32
  }
  func.func @transform_12(%arg0: i32, %arg1: i32, %arg2: memref<2x4xi32, #tpu.memory_space<smem>>, %arg3: memref<2xi32, #tpu.memory_space<smem>>) -> (i32, i32) {
    %c0_i32 = arith.constant 0 : i32
    %c0_i32_0 = arith.constant 0 : i32
    return %arg0, %c0_i32 : i32, i32
  }
  func.func @transform_13(%arg0: i32, %arg1: i32, %arg2: memref<2x4xi32, #tpu.memory_space<smem>>, %arg3: memref<2xi32, #tpu.memory_space<smem>>) -> (i32, i32) {
    %c0_i32 = arith.constant 0 : i32
    %c0_i32_0 = arith.constant 0 : i32
    return %arg0, %c0_i32 : i32, i32
  }
}

</mosaic_0001>

<llo_original>
// kernel: tpu_custom_call.1
$region0: #{tpu_custom_call.1}
  #allocation0 [shape = 'u32[]', space=smem, size = 0x4, offset = 0x4, fixed_abs, tag = 'smem constant byte address 0x4 - core index']
  #allocation1 [shape = 'u32[144,128]{1,0:T(1,128)}', space=vmem, size = 0x12000, scoped, tag = 'internal scratch']
  #allocation2 [shape = 'f32[128,128]{1,0:T(8,128)}', space=vmem, size = 0x10000, scoped, tag = 'scratch operand']
  #allocation3 [shape = 's32[1]{0}', space=sflag, size = 0x4, scoped, tag = 'scoped memory for tpu_custom_call.1']
  #allocation4 [shape = 'u8[1024]{0}', space=smem, size = 0x400, scoped, tag = 'prefetched SMEM operand 0']
  #allocation5 [shape = 'u8[512]{0}', space=smem, size = 0x200, scoped, tag = 'prefetched SMEM operand 1']
  %s0 = inlined_call_operand.vmem [shape: s32[2,4], index: 0, kind: input, shape index: {}]
  %s1 = inlined_call_operand.vmem [shape: s32[2], index: 1, kind: input, shape index: {}]
  %s2 = inlined_call_operand.vmem [shape: bf16[256,128], index: 2, kind: input, shape index: {}]
  %s3 = inlined_call_operand.hbm [shape: bf16[1280,128], index: 3, kind: input, shape index: {}]
  %s4 = inlined_call_operand.vmem [shape: s32[5,1,256], index: 4, kind: input, shape index: {}]
  %s5 = inlined_call_operand.vmem [shape: f32[256,1], index: 5, kind: input, shape index: {}]
  %s6 = inlined_call_operand.vmem [shape: bf16[128,128], index: 6, kind: input, shape index: {}]
  %s7 = inlined_call_operand.vmem [shape: f32[1,128], index: 7, kind: input, shape index: {}]
  %s8 = inlined_call_operand.vmem [shape: bf16[128,128], index: 8, kind: input, shape index: {}]
  %s9 = inlined_call_operand.vmem [shape: f32[1,128], index: 9, kind: input, shape index: {}]
  %s10 = inlined_call_operand.hbm [shape: bf16[128,128], index: 10, kind: input, shape index: {}]
  %s11 = inlined_call_operand.vmem [shape: f32[1,128], index: 11, kind: input, shape index: {}]
  %s12 = inlined_call_operand.hbm [shape: bf16[128,128], index: 12, kind: input, shape index: {}]
  %s13 = inlined_call_operand.vmem [shape: f32[1,128], index: 13, kind: input, shape index: {}]
  %s14 = inlined_call_operand.hbm [shape: bf16[256,128], index: 14, kind: output, shape index: {0}]
  %s15 = inlined_call_operand.hbm [shape: bf16[256,128], index: 15, kind: output, shape index: {1}]
  %16 = xla_tuple %s14, %s15
  %s17 = sld [smem:[#allocation0]]
  $region113: #{tpu_custom_call.1} parent=0
    _
  %s19 = ssub.s32 1, %s17
  %s20 = scalar_select 0, %s19, %s17
  %s21 = sshll.u32 %s0, 4
  %s22 = int_to_ptr.vmem [resolvable:$true] %s21
  %24 = dma.vmem_to_smem %s22, 32, [#allocation4], [#allocation3]
  %s25 = sshll.u32 %s1, 4
  %s26 = int_to_ptr.vmem [resolvable:$true] %s25
  %28 = dma.vmem_to_smem %s26, 16, [#allocation5], [#allocation3]
  %29 = dma.done [#allocation3], 48
  %30 = sfence
  $region1: #{tpu_custom_call.1} parent=0
    #allocation6 [shape = 'u8[131072]{0}', space=vmem, size = 0x20000, scoped, tag = 'input window, operand 3']
    #allocation7 [shape = 's32[2]{0}', space=sflag, size = 0x8, scoped, tag = 'scoped memory for tpu_custom_call.1']
    #allocation8 [shape = 's32[2]{0}', space=sflag, size = 0x8, scoped, tag = 'scoped memory for tpu_custom_call.1']
    #allocation9 [shape = 'u8[32768]{0}', space=vmem, size = 0x8000, scoped, tag = 'input window, operand 10, single buffered']
    #allocation10 [shape = 's32[1]{0}', space=sflag, size = 0x4, scoped, tag = 'scoped memory for tpu_custom_call.1']
    #allocation11 [shape = 'u8[32768]{0}', space=vmem, size = 0x8000, scoped, tag = 'input window, operand 12, single buffered']
    #allocation12 [shape = 'u8[65536]{0}', space=vmem, size = 0x10000, scoped, tag = 'output window, operand 0']
    #allocation13 [shape = 'u8[65536]{0}', space=vmem, size = 0x10000, scoped, tag = 'output window, operand 1']
    #allocation14 [shape = 's32[2]{0}', space=sflag, size = 0x8, scoped, tag = 'scoped memory for tpu_custom_call.1']
    %31 = vsyncpa [#allocation7], 0
    %s32 = scalar_lea.sflag [#allocation7], 1
    %33 = vsyncpa %s32, 0
    %34 = vsyncpa [#allocation10], 0
    %35 = vsyncpa [#allocation8], 0
    %s36 = scalar_lea.sflag [#allocation8], 1
    %37 = vsyncpa %s36, 0
    %38 = vsyncpa [#allocation14], 0
    %s39 = scalar_lea.sflag [#allocation14], 1
    %40 = vsyncpa %s39, 0
    loop: start=0, step=1, limit=10
    $region2: #{tpu_custom_call.1} parent=1 // loop_pre_header
      _
    $region3: #{tpu_custom_call.1} parent=1 // loop_header
      %s42 = sphi 0, %s46
      %p43 = scmp.ge.s32.totalorder %s42, 10
      %s49 = sphi 0, %s61
      %s50 = sphi 0, %s57
      %s51 = sphi 0, %s49
      %s52 = sphi 0, %s50
      %s53 = sphi 0, %s51
      %s54 = sphi 0, %s52
      %s64 = sphi 0, %s66
      %s67 = sphi 0, %s64
      %s68 = sphi 0, %s67
      %s84 = sphi 0, %s68
      %s106 = sphi 0, %s108
      %s109 = sphi 0, %s106
      %s110 = sphi 0, %s109
      %s126 = sphi 0, %s110
      %s148 = sphi 0, %s150
      %s151 = sphi 0, %s148
      %s152 = sphi 0, %s151
      %s168 = sphi 0, %s152
      %s174 = sphi 0, %s176
      %s177 = sphi 0, %s174
      %s178 = sphi 0, %s177
      %s194 = sphi 0, %s178
      %s198 = sphi 0, %s198
      %s200 = sphi 0, %s198
      %s201 = sphi 0, %s200
      %s215 = sphi 0, %s201
      %s219 = sphi 0, %s219
      %s221 = sphi 0, %s219
      %s222 = sphi 0, %s221
      %s236 = sphi 0, %s222
      %s240 = sphi 0, %s240
      %s242 = sphi 0, %s240
      %s243 = sphi 0, %s242
      %s257 = sphi 0, %s243
      %s261 = sphi 0, %s261
      %s263 = sphi 0, %s261
      %s264 = sphi 0, %s263
      %s278 = sphi 0, %s264
      %s282 = sphi 0, %s282
      %s284 = sphi 0, %s282
      %s285 = sphi 0, %s284
      %s299 = sphi 0, %s285
      %s303 = sphi 0, %s303
      %s305 = sphi 0, %s303
      %s306 = sphi 0, %s305
      %s320 = sphi 0, %s306
      %s324 = sphi 0, %s324
      %s326 = sphi 0, %s324
      %s327 = sphi 0, %s326
      %s341 = sphi 0, %s327
      %s345 = sphi 0, %s345
      %s347 = sphi 0, %s345
      %s348 = sphi 0, %s347
      %s362 = sphi 0, %s348
      %s368 = sphi 0, %s370
      %s371 = sphi 0, %s368
      %s372 = sphi 0, %s371
      %s388 = sphi 0, %s372
      %s394 = sphi 0, %s396
      %s397 = sphi 0, %s394
      %s398 = sphi 0, %s397
      %s414 = sphi 0, %s398
    $region4: #{tpu_custom_call.1} parent=1 // loop_header_branch
      %45 = sbr.rel (%p43) target = $region8
    $region5: #{tpu_custom_call.1} parent=1 // loop_body
      %s47 = ssub.s32 %s42, 1
      %s48 = ssub.s32 %s42, 2
      %s55 = sadd.s32 1, %s50
      %p56 = scmp.ge.s32.totalorder %s55, 4
      %s57 = scalar_select %p56, 0, %s55
      %s58 = sadd.s32 1, %s49
      %s59 = scalar_select %p56, %s58, %s49
      %p60 = scmp.ge.s32.totalorder %s59, 2
      %s61 = scalar_select %p60, 0, %s59
      %s62 = ssub.s32 %s49, %s61
      %p63 = scmp.eq.s32.totalorder %s62, 0
      %s65 = sadd.s32 %s64, 1
      %s66 = scalar_select %p63, %s64, %s65
      %p69 = pneg %p63
      %p70 = scmp.eq.s32.totalorder %s42, 7
      %p71 = por %p69, %p70
      %p72 = scmp.ne.s32.totalorder %s64, %s67
      %p73 = scmp.eq.s32.totalorder %s42, 0
      %p74 = por %p72, %p73
      %p75 = scmp.ne.s32.totalorder %s64, %s67
      %p76 = scmp.eq.s32.totalorder %s47, 7
      %p77 = por %p75, %p76
      %p78 = scmp.ne.s32.totalorder %s67, %s68
      %p79 = scmp.eq.s32.totalorder %s47, 0
      %p80 = por %p78, %p79
      %p81 = scmp.ne.s32.totalorder %s67, %s68
      %p82 = scmp.eq.s32.totalorder %s48, 7
      %p83 = por %p81, %p82
      %p85 = scmp.ne.s32.totalorder %s68, %s84
      %p86 = scmp.eq.s32.totalorder %s48, 0
      %p87 = por %p85, %p86
      %s88 = sshra.s32 %s50, 7
      %s89 = sand.u32 %s50, 127
      %s90 = sadd.s32 %s88, %s49
      %s91 = smul.u32 %s90, 128
      %s92 = sshra.s32 %s50, 7
      %s93 = sand.u32 %s50, 127
      %s94 = sadd.s32 %s91, %s93
      %s95 = sld [smem:[#allocation4 + %s94]]
      %s96 = sshra.s32 %s57, 7
      %s97 = sand.u32 %s57, 127
      %s98 = sadd.s32 %s96, %s61
      %s99 = smul.u32 %s98, 128
      %s100 = sshra.s32 %s57, 7
      %s101 = sand.u32 %s57, 127
      %s102 = sadd.s32 %s99, %s101
      %s103 = sld [smem:[#allocation4 + %s102]]
      %s104 = ssub.s32 %s95, %s103
      %p105 = scmp.eq.s32.totalorder %s104, 0
      %s107 = sadd.s32 %s106, 1
      %s108 = scalar_select %p105, %s106, %s107
      %p111 = pneg %p105
      %p112 = scmp.eq.s32.totalorder %s42, 7
      %p113 = por %p111, %p112
      %p114 = scmp.ne.s32.totalorder %s106, %s109
      %p115 = scmp.eq.s32.totalorder %s42, 0
      %p116 = por %p114, %p115
      %p117 = scmp.ne.s32.totalorder %s106, %s109
      %p118 = scmp.eq.s32.totalorder %s47, 7
      %p119 = por %p117, %p118
      %p120 = scmp.ne.s32.totalorder %s109, %s110
      %p121 = scmp.eq.s32.totalorder %s47, 0
      %p122 = por %p120, %p121
      %p123 = scmp.ne.s32.totalorder %s109, %s110
      %p124 = scmp.eq.s32.totalorder %s48, 7
      %p125 = por %p123, %p124
      %p127 = scmp.ne.s32.totalorder %s110, %s126
      %p128 = scmp.eq.s32.totalorder %s48, 0
      %p129 = por %p127, %p128
      %s130 = sshra.s32 %s50, 7
      %s131 = sand.u32 %s50, 127
      %s132 = sadd.s32 %s130, %s49
      %s133 = smul.u32 %s132, 128
      %s134 = sshra.s32 %s50, 7
      %s135 = sand.u32 %s50, 127
      %s136 = sadd.s32 %s133, %s135
      %s137 = sld [smem:[#allocation4 + %s136]]
      %s138 = sshra.s32 %s57, 7
      %s139 = sand.u32 %s57, 127
      %s140 = sadd.s32 %s138, %s61
      %s141 = smul.u32 %s140, 128
      %s142 = sshra.s32 %s57, 7
      %s143 = sand.u32 %s57, 127
      %s144 = sadd.s32 %s141, %s143
      %s145 = sld [smem:[#allocation4 + %s144]]
      %s146 = ssub.s32 %s137, %s145
      %p147 = scmp.eq.s32.totalorder %s146, 0
      %s149 = sadd.s32 %s148, 1
      %s150 = scalar_select %p147, %s148, %s149
      %p153 = pneg %p147
      %p154 = scmp.eq.s32.totalorder %s42, 7
      %p155 = por %p153, %p154
      %p156 = scmp.ne.s32.totalorder %s148, %s151
      %p157 = scmp.eq.s32.totalorder %s42, 0
      %p158 = por %p156, %p157
      %p159 = scmp.ne.s32.totalorder %s148, %s151
      %p160 = scmp.eq.s32.totalorder %s47, 7
      %p161 = por %p159, %p160
      %p162 = scmp.ne.s32.totalorder %s151, %s152
      %p163 = scmp.eq.s32.totalorder %s47, 0
      %p164 = por %p162, %p163
      %p165 = scmp.ne.s32.totalorder %s151, %s152
      %p166 = scmp.eq.s32.totalorder %s48, 7
      %p167 = por %p165, %p166
      %p169 = scmp.ne.s32.totalorder %s152, %s168
      %p170 = scmp.eq.s32.totalorder %s48, 0
      %p171 = por %p169, %p170
      %s172 = ssub.s32 %s49, %s61
      %p173 = scmp.eq.s32.totalorder %s172, 0
      %s175 = sadd.s32 %s174, 1
      %s176 = scalar_select %p173, %s174, %s175
      %p179 = pneg %p173
      %p180 = scmp.eq.s32.totalorder %s42, 7
      %p181 = por %p179, %p180
      %p182 = scmp.ne.s32.totalorder %s174, %s177
      %p183 = scmp.eq.s32.totalorder %s42, 0
      %p184 = por %p182, %p183
      %p185 = scmp.ne.s32.totalorder %s174, %s177
      %p186 = scmp.eq.s32.totalorder %s47, 7
      %p187 = por %p185, %p186
      %p188 = scmp.ne.s32.totalorder %s177, %s178
      %p189 = scmp.eq.s32.totalorder %s47, 0
      %p190 = por %p188, %p189
      %p191 = scmp.ne.s32.totalorder %s177, %s178
      %p192 = scmp.eq.s32.totalorder %s48, 7
      %p193 = por %p191, %p192
      %p195 = scmp.ne.s32.totalorder %s178, %s194
      %p196 = scmp.eq.s32.totalorder %s48, 0
      %p197 = por %p195, %p196
      %s199 = sadd.s32 %s198, 1
      %p202 = scmp.eq.s32.totalorder %s42, 7
      %p203 = scmp.ne.s32.totalorder %s198, %s200
      %p204 = scmp.eq.s32.totalorder %s42, 0
      %p205 = por %p203, %p204
      %p206 = scmp.ne.s32.totalorder %s198, %s200
      %p207 = scmp.eq.s32.totalorder %s47, 7
      %p208 = por %p206, %p207
      %p209 = scmp.ne.s32.totalorder %s200, %s201
      %p210 = scmp.eq.s32.totalorder %s47, 0
      %p211 = por %p209, %p210
      %p212 = scmp.ne.s32.totalorder %s200, %s201
      %p213 = scmp.eq.s32.totalorder %s48, 7
      %p214 = por %p212, %p213
      %p216 = scmp.ne.s32.totalorder %s201, %s215
      %p217 = scmp.eq.s32.totalorder %s48, 0
      %p218 = por %p216, %p217
      %s220 = sadd.s32 %s219, 1
      %p223 = scmp.eq.s32.totalorder %s42, 7
      %p224 = scmp.ne.s32.totalorder %s219, %s221
      %p225 = scmp.eq.s32.totalorder %s42, 0
      %p226 = por %p224, %p225
      %p227 = scmp.ne.s32.totalorder %s219, %s221
      %p228 = scmp.eq.s32.totalorder %s47, 7
      %p229 = por %p227, %p228
      %p230 = scmp.ne.s32.totalorder %s221, %s222
      %p231 = scmp.eq.s32.totalorder %s47, 0
      %p232 = por %p230, %p231
      %p233 = scmp.ne.s32.totalorder %s221, %s222
      %p234 = scmp.eq.s32.totalorder %s48, 7
      %p235 = por %p233, %p234
      %p237 = scmp.ne.s32.totalorder %s222, %s236
      %p238 = scmp.eq.s32.totalorder %s48, 0
      %p239 = por %p237, %p238
      %s241 = sadd.s32 %s240, 1
      %p244 = scmp.eq.s32.totalorder %s42, 7
      %p245 = scmp.ne.s32.totalorder %s240, %s242
      %p246 = scmp.eq.s32.totalorder %s42, 0
      %p247 = por %p245, %p246
      %p248 = scmp.ne.s32.totalorder %s240, %s242
      %p249 = scmp.eq.s32.totalorder %s47, 7
      %p250 = por %p248, %p249
      %p251 = scmp.ne.s32.totalorder %s242, %s243
      %p252 = scmp.eq.s32.totalorder %s47, 0
      %p253 = por %p251, %p252
      %p254 = scmp.ne.s32.totalorder %s242, %s243
      %p255 = scmp.eq.s32.totalorder %s48, 7
      %p256 = por %p254, %p255
      %p258 = scmp.ne.s32.totalorder %s243, %s257
      %p259 = scmp.eq.s32.totalorder %s48, 0
      %p260 = por %p258, %p259
      %s262 = sadd.s32 %s261, 1
      %p265 = scmp.eq.s32.totalorder %s42, 7
      %p266 = scmp.ne.s32.totalorder %s261, %s263
      %p267 = scmp.eq.s32.totalorder %s42, 0
      %p268 = por %p266, %p267
      %p269 = scmp.ne.s32.totalorder %s261, %s263
      %p270 = scmp.eq.s32.totalorder %s47, 7
      %p271 = por %p269, %p270
      %p272 = scmp.ne.s32.totalorder %s263, %s264
      %p273 = scmp.eq.s32.totalorder %s47, 0
      %p274 = por %p272, %p273
      %p275 = scmp.ne.s32.totalorder %s263, %s264
      %p276 = scmp.eq.s32.totalorder %s48, 7
      %p277 = por %p275, %p276
      %p279 = scmp.ne.s32.totalorder %s264, %s278
      %p280 = scmp.eq.s32.totalorder %s48, 0
      %p281 = por %p279, %p280
      %s283 = sadd.s32 %s282, 1
      %p286 = scmp.eq.s32.totalorder %s42, 7
      %p287 = scmp.ne.s32.totalorder %s282, %s284
      %p288 = scmp.eq.s32.totalorder %s42, 0
      %p289 = por %p287, %p288
      %p290 = scmp.ne.s32.totalorder %s282, %s284
      %p291 = scmp.eq.s32.totalorder %s47, 7
      %p292 = por %p290, %p291
      %p293 = scmp.ne.s32.totalorder %s284, %s285
      %p294 = scmp.eq.s32.totalorder %s47, 0
      %p295 = por %p293, %p294
      %p296 = scmp.ne.s32.totalorder %s284, %s285
      %p297 = scmp.eq.s32.totalorder %s48, 7
      %p298 = por %p296, %p297
      %p300 = scmp.ne.s32.totalorder %s285, %s299
      %p301 = scmp.eq.s32.totalorder %s48, 0
      %p302 = por %p300, %p301
      %s304 = sadd.s32 %s303, 1
      %p307 = scmp.eq.s32.totalorder %s42, 7
      %p308 = scmp.ne.s32.totalorder %s303, %s305
      %p309 = scmp.eq.s32.totalorder %s42, 0
      %p310 = por %p308, %p309
      %p311 = scmp.ne.s32.totalorder %s303, %s305
      %p312 = scmp.eq.s32.totalorder %s47, 7
      %p313 = por %p311, %p312
      %p314 = scmp.ne.s32.totalorder %s305, %s306
      %p315 = scmp.eq.s32.totalorder %s47, 0
      %p316 = por %p314, %p315
      %p317 = scmp.ne.s32.totalorder %s305, %s306
      %p318 = scmp.eq.s32.totalorder %s48, 7
      %p319 = por %p317, %p318
      %p321 = scmp.ne.s32.totalorder %s306, %s320
      %p322 = scmp.eq.s32.totalorder %s48, 0
      %p323 = por %p321, %p322
      %s325 = sadd.s32 %s324, 1
      %p328 = scmp.eq.s32.totalorder %s42, 7
      %p329 = scmp.ne.s32.totalorder %s324, %s326
      %p330 = scmp.eq.s32.totalorder %s42, 0
      %p331 = por %p329, %p330
      %p332 = scmp.ne.s32.totalorder %s324, %s326
      %p333 = scmp.eq.s32.totalorder %s47, 7
      %p334 = por %p332, %p333
      %p335 = scmp.ne.s32.totalorder %s326, %s327
      %p336 = scmp.eq.s32.totalorder %s47, 0
      %p337 = por %p335, %p336
      %p338 = scmp.ne.s32.totalorder %s326, %s327
      %p339 = scmp.eq.s32.totalorder %s48, 7
      %p340 = por %p338, %p339
      %p342 = scmp.ne.s32.totalorder %s327, %s341
      %p343 = scmp.eq.s32.totalorder %s48, 0
      %p344 = por %p342, %p343
      %s346 = sadd.s32 %s345, 1
      %p349 = scmp.eq.s32.totalorder %s42, 7
      %p350 = scmp.ne.s32.totalorder %s345, %s347
      %p351 = scmp.eq.s32.totalorder %s42, 0
      %p352 = por %p350, %p351
      %p353 = scmp.ne.s32.totalorder %s345, %s347
      %p354 = scmp.eq.s32.totalorder %s47, 7
      %p355 = por %p353, %p354
      %p356 = scmp.ne.s32.totalorder %s347, %s348
      %p357 = scmp.eq.s32.totalorder %s47, 0
      %p358 = por %p356, %p357
      %p359 = scmp.ne.s32.totalorder %s347, %s348
      %p360 = scmp.eq.s32.totalorder %s48, 7
      %p361 = por %p359, %p360
      %p363 = scmp.ne.s32.totalorder %s348, %s362
      %p364 = scmp.eq.s32.totalorder %s48, 0
      %p365 = por %p363, %p364
      %s366 = ssub.s32 %s49, %s61
      %p367 = scmp.eq.s32.totalorder %s366, 0
      %s369 = sadd.s32 %s368, 1
      %s370 = scalar_select %p367, %s368, %s369
      %p373 = pneg %p367
      %p374 = scmp.eq.s32.totalorder %s42, 7
      %p375 = por %p373, %p374
      %p376 = scmp.ne.s32.totalorder %s368, %s371
      %p377 = scmp.eq.s32.totalorder %s42, 0
      %p378 = por %p376, %p377
      %p379 = scmp.ne.s32.totalorder %s368, %s371
      %p380 = scmp.eq.s32.totalorder %s47, 7
      %p381 = por %p379, %p380
      %p382 = scmp.ne.s32.totalorder %s371, %s372
      %p383 = scmp.eq.s32.totalorder %s47, 0
      %p384 = por %p382, %p383
      %p385 = scmp.ne.s32.totalorder %s371, %s372
      %p386 = scmp.eq.s32.totalorder %s48, 7
      %p387 = por %p385, %p386
      %p389 = scmp.ne.s32.totalorder %s372, %s388
      %p390 = scmp.eq.s32.totalorder %s48, 0
      %p391 = por %p389, %p390
      %s392 = ssub.s32 %s49, %s61
      %p393 = scmp.eq.s32.totalorder %s392, 0
      %s395 = sadd.s32 %s394, 1
      %s396 = scalar_select %p393, %s394, %s395
      %p399 = pneg %p393
      %p400 = scmp.eq.s32.totalorder %s42, 7
      %p401 = por %p399, %p400
      %p402 = scmp.ne.s32.totalorder %s394, %s397
      %p403 = scmp.eq.s32.totalorder %s42, 0
      %p404 = por %p402, %p403
      %p405 = scmp.ne.s32.totalorder %s394, %s397
      %p406 = scmp.eq.s32.totalorder %s47, 7
      %p407 = por %p405, %p406
      %p408 = scmp.ne.s32.totalorder %s397, %s398
      %p409 = scmp.eq.s32.totalorder %s47, 0
      %p410 = por %p408, %p409
      %p411 = scmp.ne.s32.totalorder %s397, %s398
      %p412 = scmp.eq.s32.totalorder %s48, 7
      %p413 = por %p411, %p412
      %p415 = scmp.ne.s32.totalorder %s398, %s414
      %p416 = scmp.eq.s32.totalorder %s48, 0
      %p417 = por %p415, %p416
      %p418 = scmp.le.s32.totalorder 1, %s42
      %p419 = scmp.lt.s32.totalorder %s42, 9
      %p420 = pnand %p418, %p419
      %p421 = pneg %p420
      // Predicated region
      $region9: #{tpu_custom_call.1} parent=5 // pred_check
        _
      $region10: #{tpu_custom_call.1} parent=5 // pred_check_branch
        %423 = sbr.rel (%p420) target = $region12
      $region11: #{tpu_custom_call.1} parent=5 // pred_region
        %s424 = ssub.s32 %s42, 1
        // Predicated region
        $region13: #{tpu_custom_call.1} parent=11 // pred_check
          %p425 = pneg %p211
        $region14: #{tpu_custom_call.1} parent=11 // pred_check_branch
          %427 = sbr.rel (%p425) target = $region16
        $region15: #{tpu_custom_call.1} parent=11 // pred_region
          _
        $region16: #{tpu_custom_call.1} parent=11 // pred_fallthru
          _
        // Predicated region
        $region17: #{tpu_custom_call.1} parent=11 // pred_check
          %p428 = pneg %p232
        $region18: #{tpu_custom_call.1} parent=11 // pred_check_branch
          %430 = sbr.rel (%p428) target = $region20
        $region19: #{tpu_custom_call.1} parent=11 // pred_region
          _
        $region20: #{tpu_custom_call.1} parent=11 // pred_fallthru
          _
        // Predicated region
        $region21: #{tpu_custom_call.1} parent=11 // pred_check
          %p431 = pneg %p253
        $region22: #{tpu_custom_call.1} parent=11 // pred_check_branch
          %433 = sbr.rel (%p431) target = $region24
        $region23: #{tpu_custom_call.1} parent=11 // pred_region
          _
        $region24: #{tpu_custom_call.1} parent=11 // pred_fallthru
          _
        // Predicated region
        $region25: #{tpu_custom_call.1} parent=11 // pred_check
          %p434 = pneg %p274
        $region26: #{tpu_custom_call.1} parent=11 // pred_check_branch
          %436 = sbr.rel (%p434) target = $region28
        $region27: #{tpu_custom_call.1} parent=11 // pred_region
          _
        $region28: #{tpu_custom_call.1} parent=11 // pred_fallthru
          _
        // Predicated region
        $region29: #{tpu_custom_call.1} parent=11 // pred_check
          %p437 = pneg %p295
        $region30: #{tpu_custom_call.1} parent=11 // pred_check_branch
          %439 = sbr.rel (%p437) target = $region32
        $region31: #{tpu_custom_call.1} parent=11 // pred_region
          %s441 = ssub.s32 1024, 1024
          %442 = vsyncadd [#allocation10], %s441
          %s443 = sshll.u32 [#allocation9], 4
          %s444 = int_to_ptr.vmem [resolvable:$true] %s443
          %449 = dma.hbm_to_vmem [thread:$0]  %s10, 1024, %s444, [#allocation10], 64, 64, 4
        $region32: #{tpu_custom_call.1} parent=11 // pred_fallthru
          _
        // Predicated region
        $region33: #{tpu_custom_call.1} parent=11 // pred_check
          %p450 = pneg %p316
        $region34: #{tpu_custom_call.1} parent=11 // pred_check_branch
          %452 = sbr.rel (%p450) target = $region36
        $region35: #{tpu_custom_call.1} parent=11 // pred_region
          _
        $region36: #{tpu_custom_call.1} parent=11 // pred_fallthru
          _
        // Predicated region
        $region37: #{tpu_custom_call.1} parent=11 // pred_check
          %p453 = pneg %p337
        $region38: #{tpu_custom_call.1} parent=11 // pred_check_branch
          %455 = sbr.rel (%p453) target = $region40
        $region39: #{tpu_custom_call.1} parent=11 // pred_region
          %s457 = ssub.s32 1024, 1024
          %458 = vsyncadd [#allocation10], %s457
          %s459 = sshll.u32 [#allocation11], 4
          %s460 = int_to_ptr.vmem [resolvable:$true] %s459
          %465 = dma.hbm_to_vmem [thread:$0]  %s12, 1024, %s460, [#allocation10], 64, 64, 4
        $region40: #{tpu_custom_call.1} parent=11 // pred_fallthru
          _
        // Predicated region
        $region41: #{tpu_custom_call.1} parent=11 // pred_check
          %p466 = pneg %p358
        $region42: #{tpu_custom_call.1} parent=11 // pred_check_branch
          %468 = sbr.rel (%p466) target = $region44
        $region43: #{tpu_custom_call.1} parent=11 // pred_region
          _
        $region44: #{tpu_custom_call.1} parent=11 // pred_fallthru
          _
      $region12: #{tpu_custom_call.1} parent=5 // pred_fallthru
        _
      %p469 = scmp.lt.s32.totalorder %s42, 8
      // Predicated region
      $region45: #{tpu_custom_call.1} parent=5 // pred_check
        %p470 = pneg %p469
      $region46: #{tpu_custom_call.1} parent=5 // pred_check_branch
        %472 = sbr.rel (%p470) target = $region48
      $region47: #{tpu_custom_call.1} parent=5 // pred_region
        // Predicated region
        $region49: #{tpu_custom_call.1} parent=47 // pred_check
          %p473 = pneg %p74
        $region50: #{tpu_custom_call.1} parent=47 // pred_check_branch
          %475 = sbr.rel (%p473) target = $region52
        $region51: #{tpu_custom_call.1} parent=47 // pred_region
          %s476 = smul.u32 16, %s49
          %p477 = scmp.lt.s32.totalorder %s476, 31
          %s478 = scalar_select %p477, %s476, 31
          %s479 = smul.addr %s478, 4
          %s480 = scalar_lea.vmem %s2, %s479
          %s481 = smul.u32 16, %s49
        $region52: #{tpu_custom_call.1} parent=47 // pred_fallthru
          _
        // Predicated region
        $region53: #{tpu_custom_call.1} parent=47 // pred_check
          %p482 = pneg %p116
        $region54: #{tpu_custom_call.1} parent=47 // pred_check_branch
          %484 = sbr.rel (%p482) target = $region56
        $region55: #{tpu_custom_call.1} parent=47 // pred_region
          %s485 = sand.u32 %s106, 1
          %s486 = scalar_lea.sflag [#allocation7], %s485
          %s487 = sand.u32 %s106, 1
          %s488 = smul.addr %s487, 128
          %s489 = scalar_lea.vmem [#allocation6], %s488
          %s490 = sshra.s32 %s50, 7
          %s491 = sand.u32 %s50, 127
          %s492 = sadd.s32 %s490, %s49
          %s493 = smul.u32 %s492, 128
          %s494 = sshra.s32 %s50, 7
          %s495 = sand.u32 %s50, 127
          %s496 = sadd.s32 %s493, %s495
          %s497 = sld [smem:[#allocation4 + %s496]]
          %s498 = smul.u32 32, %s497
          %s500 = ssub.s32 2048, 2048
          %501 = vsyncadd %s486, %s500
          %s502 = smul.addr %s498, 64
          %s503 = scalar_lea.hbm %s3, %s502
          %s504 = sshll.u32 %s489, 4
          %s505 = int_to_ptr.vmem [resolvable:$true] %s504
          %510 = dma.hbm_to_vmem [thread:$0]  %s503, 2048, %s505, %s486, 64, 64, 4
        $region56: #{tpu_custom_call.1} parent=47 // pred_fallthru
          _
        // Predicated region
        $region57: #{tpu_custom_call.1} parent=47 // pred_check
          %p511 = pneg %p158
        $region58: #{tpu_custom_call.1} parent=47 // pred_check_branch
          %513 = sbr.rel (%p511) target = $region60
        $region59: #{tpu_custom_call.1} parent=47 // pred_region
          %s514 = sshra.s32 %s50, 7
          %s515 = sand.u32 %s50, 127
          %s516 = sadd.s32 %s514, %s49
          %s517 = smul.u32 %s516, 128
          %s518 = sshra.s32 %s50, 7
          %s519 = sand.u32 %s50, 127
          %s520 = sadd.s32 %s517, %s519
          %s521 = sld [smem:[#allocation4 + %s520]]
          %p522 = scmp.lt.s32.totalorder %s521, 4
          %s523 = scalar_select %p522, %s521, 4
          %s524 = smul.addr %s523, 2
          %s525 = scalar_lea.vmem %s4, %s524
          %s526 = sshra.s32 %s50, 7
          %s527 = sand.u32 %s50, 127
          %s528 = sadd.s32 %s526, %s49
          %s529 = smul.u32 %s528, 128
          %s530 = sshra.s32 %s50, 7
          %s531 = sand.u32 %s50, 127
          %s532 = sadd.s32 %s529, %s531
          %s533 = sld [smem:[#allocation4 + %s532]]
        $region60: #{tpu_custom_call.1} parent=47 // pred_fallthru
          _
        // Predicated region
        $region61: #{tpu_custom_call.1} parent=47 // pred_check
          %p534 = pneg %p184
        $region62: #{tpu_custom_call.1} parent=47 // pred_check_branch
          %536 = sbr.rel (%p534) target = $region64
        $region63: #{tpu_custom_call.1} parent=47 // pred_region
          %s537 = smul.u32 16, %s49
          %p538 = scmp.lt.s32.totalorder %s537, 31
          %s539 = scalar_select %p538, %s537, 31
          %s540 = smul.addr %s539, 8
          %s541 = scalar_lea.vmem %s5, %s540
          %s542 = smul.u32 16, %s49
        $region64: #{tpu_custom_call.1} parent=47 // pred_fallthru
          _
      $region48: #{tpu_custom_call.1} parent=5 // pred_fallthru
        _
      %p543 = scmp.le.s32.totalorder 1, %s42
      %p544 = scmp.lt.s32.totalorder %s42, 9
      %p545 = pnand %p543, %p544
      %p546 = pneg %p545
      // Predicated region
      $region65: #{tpu_custom_call.1} parent=5 // pred_check
        _
      $region66: #{tpu_custom_call.1} parent=5 // pred_check_branch
        %548 = sbr.rel (%p545) target = $region68
      $region67: #{tpu_custom_call.1} parent=5 // pred_region
        %s549 = ssub.s32 %s42, 1
        %s550 = sand.u32 %s109, 1
        %s551 = scalar_lea.sflag [#allocation7], %s550
        %s552 = sand.u32 %s109, 1
        %s553 = smul.addr %s552, 128
        %s554 = scalar_lea.vmem [#allocation6], %s553
        // Predicated region
        $region69: #{tpu_custom_call.1} parent=67 // pred_check
          %p555 = pneg %p122
        $region70: #{tpu_custom_call.1} parent=67 // pred_check_branch
          %557 = sbr.rel (%p555) target = $region72
        $region71: #{tpu_custom_call.1} parent=67 // pred_region
          %558 = dma.done %s551, 2048
        $region72: #{tpu_custom_call.1} parent=67 // pred_fallthru
          _
        // Predicated region
        $region73: #{tpu_custom_call.1} parent=67 // pred_check
          %p559 = pneg %p295
        $region74: #{tpu_custom_call.1} parent=67 // pred_check_branch
          %561 = sbr.rel (%p559) target = $region76
        $region75: #{tpu_custom_call.1} parent=67 // pred_region
          %562 = dma.done [#allocation10], 1024
        $region76: #{tpu_custom_call.1} parent=67 // pred_fallthru
          _
        // Predicated region
        $region77: #{tpu_custom_call.1} parent=67 // pred_check
          %p563 = pneg %p337
        $region78: #{tpu_custom_call.1} parent=67 // pred_check_branch
          %565 = sbr.rel (%p563) target = $region80
        $region79: #{tpu_custom_call.1} parent=67 // pred_region
          %566 = dma.done [#allocation10], 1024
        $region80: #{tpu_custom_call.1} parent=67 // pred_fallthru
          _
        %s567 = smul.u32 16, %s51
        %p568 = scmp.lt.s32.totalorder %s567, 31
        %s569 = scalar_select %p568, %s567, 31
        %s570 = smul.addr %s569, 4
        %s571 = scalar_lea.vmem %s2, %s570
        %p572 = pneg %p80
        %p573 = pneg %p77
        %s574 = sand.u32 %s109, 1
        %s575 = scalar_lea.sflag [#allocation7], %s574
        %s576 = sand.u32 %s109, 1
        %s577 = smul.addr %s576, 128
        %s578 = scalar_lea.vmem [#allocation6], %s577
        %p579 = pneg %p122
        %p580 = pneg %p119
        %s581 = sshra.s32 %s52, 7
        %s582 = sand.u32 %s52, 127
        %s583 = sadd.s32 %s581, %s51
        %s584 = smul.u32 %s583, 128
        %s585 = sshra.s32 %s52, 7
        %s586 = sand.u32 %s52, 127
        %s587 = sadd.s32 %s584, %s586
        %s588 = sld [smem:[#allocation4 + %s587]]
        %p589 = scmp.lt.s32.totalorder %s588, 4
        %s590 = scalar_select %p589, %s588, 4
        %s591 = smul.addr %s590, 2
        %s592 = scalar_lea.vmem %s4, %s591
        %p593 = pneg %p164
        %p594 = pneg %p161
        %s595 = smul.u32 16, %s51
        %p596 = scmp.lt.s32.totalorder %s595, 31
        %s597 = scalar_select %p596, %s595, 31
        %s598 = smul.addr %s597, 8
        %s599 = scalar_lea.vmem %s5, %s598
        %p600 = pneg %p190
        %p601 = pneg %p187
        %p602 = pneg %p211
        %p603 = pneg %p208
        %p604 = pneg %p232
        %p605 = pneg %p229
        %p606 = pneg %p253
        %p607 = pneg %p250
        %p608 = pneg %p274
        %p609 = pneg %p271
        %p610 = pneg %p295
        %p611 = pneg %p292
        %p612 = pneg %p316
        %p613 = pneg %p313
        %p614 = pneg %p337
        %p615 = pneg %p334
        %p616 = pneg %p358
        %p617 = pneg %p355
        %p618 = pneg %p384
        %p619 = pneg %p381
        %s620 = sand.u32 %s371, 1
        %s621 = scalar_lea.sflag [#allocation8], %s620
        %s622 = sand.u32 %s371, 1
        %s623 = smul.addr %s622, 64
        %s624 = scalar_lea.vmem [#allocation12], %s623
        %p625 = pneg %p410
        %p626 = pneg %p407
        %s627 = sand.u32 %s397, 1
        %s628 = scalar_lea.sflag [#allocation14], %s627
        %s629 = sand.u32 %s397, 1
        %s630 = smul.addr %s629, 64
        %s631 = scalar_lea.vmem [#allocation13], %s630
        %s632 = smul.u32 16, %s51
        %p633 = scmp.lt.s32.totalorder %s632, 31
        %s634 = scalar_select %p633, %s632, 31
        %s635 = smul.addr %s634, 4
        %s636 = scalar_lea.vmem %s2, %s635
        %s637 = smul.u32 16, %s51
        %s638 = sshra.s32 %s52, 7
        %s639 = sand.u32 %s52, 127
        %s640 = sadd.s32 %s638, %s51
        %s641 = smul.u32 %s640, 128
        %s642 = sshra.s32 %s52, 7
        %s643 = sand.u32 %s52, 127
        %s644 = sadd.s32 %s641, %s643
        %s645 = sld [smem:[#allocation4 + %s644]]
        %s646 = smul.u32 32, %s645
        %s647 = sshra.s32 %s52, 7
        %s648 = sand.u32 %s52, 127
        %s649 = sadd.s32 %s647, %s51
        %s650 = smul.u32 %s649, 128
        %s651 = sshra.s32 %s52, 7
        %s652 = sand.u32 %s52, 127
        %s653 = sadd.s32 %s650, %s652
        %s654 = sld [smem:[#allocation4 + %s653]]
        %p655 = scmp.lt.s32.totalorder %s654, 4
        %s656 = scalar_select %p655, %s654, 4
        %s657 = smul.addr %s656, 2
        %s658 = scalar_lea.vmem %s4, %s657
        %s659 = sshra.s32 %s52, 7
        %s660 = sand.u32 %s52, 127
        %s661 = sadd.s32 %s659, %s51
        %s662 = smul.u32 %s661, 128
        %s663 = sshra.s32 %s52, 7
        %s664 = sand.u32 %s52, 127
        %s665 = sadd.s32 %s662, %s664
        %s666 = sld [smem:[#allocation4 + %s665]]
        %s667 = smul.u32 16, %s51
        %p668 = scmp.lt.s32.totalorder %s667, 31
        %s669 = scalar_select %p668, %s667, 31
        %s670 = smul.addr %s669, 8
        %s671 = scalar_lea.vmem %s5, %s670
        %s672 = smul.u32 16, %s51
        %s673 = smul.u32 16, %s51
        %s674 = smul.u32 16, %s51
        %p676 = scmp.eq.s32.totalorder %s52, 0
        // Predicated region
        $region81: #{tpu_custom_call.1} parent=67 // pred_check
          %p677 = pneg %p676
        $region82: #{tpu_custom_call.1} parent=67 // pred_check_branch
          %679 = sbr.rel (%p677) target = $region84
        $region83: #{tpu_custom_call.1} parent=67 // pred_region
          %680 = vst [vmem:[#allocation2] sm:$0xff] 0.0
          %681 = vst [vmem:[#allocation2 + $0x8] sm:$0xff] 0.0
          %682 = vst [vmem:[#allocation2 + $0x10] sm:$0xff] 0.0
          %683 = vst [vmem:[#allocation2 + $0x18] sm:$0xff] 0.0
          %684 = vst [vmem:[#allocation2 + $0x20] sm:$0xff] 0.0
          %685 = vst [vmem:[#allocation2 + $0x28] sm:$0xff] 0.0
          %686 = vst [vmem:[#allocation2 + $0x30] sm:$0xff] 0.0
          %687 = vst [vmem:[#allocation2 + $0x38] sm:$0xff] 0.0
          %688 = vst [vmem:[#allocation2 + $0x40] sm:$0xff] 0.0
          %689 = vst [vmem:[#allocation2 + $0x48] sm:$0xff] 0.0
          %690 = vst [vmem:[#allocation2 + $0x50] sm:$0xff] 0.0
          %691 = vst [vmem:[#allocation2 + $0x58] sm:$0xff] 0.0
          %692 = vst [vmem:[#allocation2 + $0x60] sm:$0xff] 0.0
          %693 = vst [vmem:[#allocation2 + $0x68] sm:$0xff] 0.0
          %694 = vst [vmem:[#allocation2 + $0x70] sm:$0xff] 0.0
          %695 = vst [vmem:[#allocation2 + $0x78] sm:$0xff] 0.0
          %v696 = vld [vmem:[%s636] sm:$0xf]
          %v697 = vld [vmem:[%s636 + $0x4] sm:$0xf]
          %v698 = vld [vmem:[%s636 + $0x8] sm:$0xf]
          %v699 = vld [vmem:[%s636 + $0xc] sm:$0xf]
          %v700 = vld [vmem:[%s636 + $0x10] sm:$0xf]
          %v701 = vld [vmem:[%s636 + $0x14] sm:$0xf]
          %v702 = vld [vmem:[%s636 + $0x18] sm:$0xf]
          %v703 = vld [vmem:[%s636 + $0x1c] sm:$0xf]
          %v704 = vld [vmem:[%s636 + $0x20] sm:$0xf]
          %v705 = vld [vmem:[%s636 + $0x24] sm:$0xf]
          %v706 = vld [vmem:[%s636 + $0x28] sm:$0xf]
          %v707 = vld [vmem:[%s636 + $0x2c] sm:$0xf]
          %v708 = vld [vmem:[%s636 + $0x30] sm:$0xf]
          %v709 = vld [vmem:[%s636 + $0x34] sm:$0xf]
          %v710 = vld [vmem:[%s636 + $0x38] sm:$0xf]
          %v711 = vld [vmem:[%s636 + $0x3c] sm:$0xf]
          %v712 = vld [vmem:[%s6] sm:$0xf]
          %v713 = vld [vmem:[%s6 + $0x4] sm:$0xf]
          %v714 = vld [vmem:[%s6 + $0x8] sm:$0xf]
          %v715 = vld [vmem:[%s6 + $0xc] sm:$0xf]
          %v716 = vld [vmem:[%s6 + $0x10] sm:$0xf]
          %v717 = vld [vmem:[%s6 + $0x14] sm:$0xf]
          %v718 = vld [vmem:[%s6 + $0x18] sm:$0xf]
          %v719 = vld [vmem:[%s6 + $0x1c] sm:$0xf]
          %v720 = vld [vmem:[%s6 + $0x20] sm:$0xf]
          %v721 = vld [vmem:[%s6 + $0x24] sm:$0xf]
          %v722 = vld [vmem:[%s6 + $0x28] sm:$0xf]
          %v723 = vld [vmem:[%s6 + $0x2c] sm:$0xf]
          %v724 = vld [vmem:[%s6 + $0x30] sm:$0xf]
          %v725 = vld [vmem:[%s6 + $0x34] sm:$0xf]
          %v726 = vld [vmem:[%s6 + $0x38] sm:$0xf]
          %v727 = vld [vmem:[%s6 + $0x3c] sm:$0xf]
          %v728 = vld [vmem:[%s7] sm:$0x1]
          %v730 = vlaneseq
          %v731 = vshrl.u32 %v730, 7
          %v732 = vsub.s32 0, %v731
          %v733 = vrot.slane %v728, %v732
          %v751 = vunpack.c.l.b16 %v696
          %v752 = vunpack.c.l.b16 %v697
          %v753 = vunpack.c.l.b16 %v698
          %v754 = vunpack.c.l.b16 %v699
          %v755 = vunpack.c.l.b16 %v700
          %v756 = vunpack.c.l.b16 %v701
          %v757 = vunpack.c.l.b16 %v702
          %v758 = vunpack.c.l.b16 %v703
          %v759 = vunpack.c.l.b16 %v704
          %v760 = vunpack.c.l.b16 %v705
          %v761 = vunpack.c.l.b16 %v706
          %v762 = vunpack.c.l.b16 %v707
          %v763 = vunpack.c.l.b16 %v708
          %v764 = vunpack.c.l.b16 %v709
          %v765 = vunpack.c.l.b16 %v710
          %v766 = vunpack.c.l.b16 %v711
          %v767 = vpack.c.b16 %v752, %v751
          %v768 = vpack.c.b16 %v754, %v753
          %v769 = vpack.c.b16 %v756, %v755
          %v770 = vpack.c.b16 %v758, %v757
          %v771 = vpack.c.b16 %v760, %v759
          %v772 = vpack.c.b16 %v762, %v761
          %v773 = vpack.c.b16 %v764, %v763
          %v774 = vpack.c.b16 %v766, %v765
          %v799 = vunpack.c.l.b16 %v712
          %v800 = vunpack.c.l.b16 %v713
          %v801 = vunpack.c.l.b16 %v714
          %v802 = vunpack.c.l.b16 %v715
          %v803 = vunpack.c.l.b16 %v716
          %v804 = vunpack.c.l.b16 %v717
          %v805 = vunpack.c.l.b16 %v718
          %v806 = vunpack.c.l.b16 %v719
          %v807 = vunpack.c.l.b16 %v720
          %v808 = vunpack.c.l.b16 %v721
          %v809 = vunpack.c.l.b16 %v722
          %v810 = vunpack.c.l.b16 %v723
          %v811 = vunpack.c.l.b16 %v724
          %v812 = vunpack.c.l.b16 %v725
          %v813 = vunpack.c.l.b16 %v726
          %v814 = vunpack.c.l.b16 %v727
          %v815 = vpack.c.b16 %v800, %v799
          %v816 = vpack.c.b16 %v802, %v801
          %v817 = vpack.c.b16 %v804, %v803
          %v818 = vpack.c.b16 %v806, %v805
          %v819 = vpack.c.b16 %v808, %v807
          %v820 = vpack.c.b16 %v810, %v809
          %v821 = vpack.c.b16 %v812, %v811
          %v822 = vpack.c.b16 %v814, %v813
          %831 = vmatprep.subr.bf16.mxu0 0
          %832 = vmatpush1.bf16.msra.mxu0 %v815
          %833 = vmatprep.subr.bf16.mxu0 0
          %834 = vmatpush1.bf16.msra.mxu0 %v816
          %835 = vmatprep.subr.bf16.mxu0 0
          %836 = vmatpush1.bf16.msra.mxu0 %v817
          %837 = vmatprep.subr.bf16.mxu0 0
          %838 = vmatpush1.bf16.msra.mxu0 %v818
          %839 = vmatprep.subr.bf16.mxu0 0
          %840 = vmatpush1.bf16.msra.mxu0 %v819
          %841 = vmatprep.subr.bf16.mxu0 0
          %842 = vmatpush1.bf16.msra.mxu0 %v820
          %843 = vmatprep.subr.bf16.mxu0 0
          %844 = vmatpush1.bf16.msra.mxu0 %v821
          %845 = vmatprep.subr.bf16.mxu0 0
          %846 = vmatpush1.bf16.msra.mxu0 %v822
          %847 = vmatprep.subr.bf16.mxu0 0
          %848 = vmatpush1.bf16.msra.mxu0 0
          %849 = vmatprep.subr.bf16.mxu0 0
          %850 = vmatpush1.bf16.msra.mxu0 0
          %851 = vmatprep.subr.bf16.mxu0 0
          %852 = vmatpush1.bf16.msra.mxu0 0
          %853 = vmatprep.subr.bf16.mxu0 0
          %854 = vmatpush1.bf16.msra.mxu0 0
          %855 = vmatprep.subr.bf16.mxu0 0
          %856 = vmatpush1.bf16.msra.mxu0 0
          %857 = vmatprep.subr.bf16.mxu0 0
          %858 = vmatpush1.bf16.msra.mxu0 0
          %859 = vmatprep.subr.bf16.mxu0 0
          %860 = vmatpush1.bf16.msra.mxu0 0
          %861 = vmatprep.subr.bf16.mxu0 0
          %862 = vmatpush1.bf16.msra.mxu0 0
          %863 = vmatprep.mubr.bf16.mxu0 0
          %864 = vmatmul.mubr.bf16.gmra.mrb[0].mxu0 %v767
          %v865 = vpop.f32.mrb[0].mxu0
          %v866 = vadd.f32 %v733, %v865
          %v867 = vpop.f32.mrb[0].mxu0
          %v868 = vpop.f32.mrb[0].mxu0
          %v869 = vadd.f32 %v733, %v868
          %v870 = vpop.f32.mrb[0].mxu0
          %871 = vmatprep.mubr.bf16.mxu0 0
          %872 = vmatmul.mubr.bf16.gmra.mrb[0].mxu0 %v768
          %v873 = vpop.f32.mrb[0].mxu0
          %v874 = vadd.f32 %v733, %v873
          %v875 = vpop.f32.mrb[0].mxu0
          %v876 = vpop.f32.mrb[0].mxu0
          %v877 = vadd.f32 %v733, %v876
          %v878 = vpop.f32.mrb[0].mxu0
          %879 = vmatprep.mubr.bf16.mxu0 0
          %880 = vmatmul.mubr.bf16.gmra.mrb[0].mxu0 %v769
          %v881 = vpop.f32.mrb[0].mxu0
          %v882 = vadd.f32 %v733, %v881
          %v883 = vpop.f32.mrb[0].mxu0
          %v884 = vpop.f32.mrb[0].mxu0
          %v885 = vadd.f32 %v733, %v884
          %v886 = vpop.f32.mrb[0].mxu0
          %887 = vmatprep.mubr.bf16.mxu0 0
          %888 = vmatmul.mubr.bf16.gmra.mrb[0].mxu0 %v770
          %v889 = vpop.f32.mrb[0].mxu0
          %v890 = vadd.f32 %v733, %v889
          %v891 = vpop.f32.mrb[0].mxu0
          %v892 = vpop.f32.mrb[0].mxu0
          %v893 = vadd.f32 %v733, %v892
          %v894 = vpop.f32.mrb[0].mxu0
          %895 = vmatprep.mubr.bf16.mxu0 0
          %896 = vmatmul.mubr.bf16.gmra.mrb[0].mxu0 %v771
          %v897 = vpop.f32.mrb[0].mxu0
          %v898 = vadd.f32 %v733, %v897
          %v899 = vpop.f32.mrb[0].mxu0
          %v900 = vpop.f32.mrb[0].mxu0
          %v901 = vadd.f32 %v733, %v900
          %v902 = vpop.f32.mrb[0].mxu0
          %903 = vmatprep.mubr.bf16.mxu0 0
          %904 = vmatmul.mubr.bf16.gmra.mrb[0].mxu0 %v772
          %v905 = vpop.f32.mrb[0].mxu0
          %v906 = vadd.f32 %v733, %v905
          %v907 = vpop.f32.mrb[0].mxu0
          %v908 = vpop.f32.mrb[0].mxu0
          %v909 = vadd.f32 %v733, %v908
          %v910 = vpop.f32.mrb[0].mxu0
          %911 = vmatprep.mubr.bf16.mxu0 0
          %912 = vmatmul.mubr.bf16.gmra.mrb[0].mxu0 %v773
          %v913 = vpop.f32.mrb[0].mxu0
          %v914 = vadd.f32 %v733, %v913
          %v915 = vpop.f32.mrb[0].mxu0
          %v916 = vpop.f32.mrb[0].mxu0
          %v917 = vadd.f32 %v733, %v916
          %v918 = vpop.f32.mrb[0].mxu0
          %919 = vmatprep.mubr.bf16.mxu0 0
          %920 = vmatmul.mubr.bf16.gmra.mrb[0].mxu0 %v774
          %v921 = vpop.f32.mrb[0].mxu0
          %v922 = vadd.f32 %v733, %v921
          %v923 = vpop.f32.mrb[0].mxu0
          %v924 = vpop.f32.mrb[0].mxu0
          %v925 = vadd.f32 %v733, %v924
          %v926 = vpop.f32.mrb[0].mxu0
          %927 = vdwg.mxu0
          %v928 = vmax.f32 %v866, 0.0
          %v929 = vmax.f32 %v869, 0.0
          %v930 = vmax.f32 %v874, 0.0
          %v931 = vmax.f32 %v877, 0.0
          %v932 = vmax.f32 %v882, 0.0
          %v933 = vmax.f32 %v885, 0.0
          %v934 = vmax.f32 %v890, 0.0
          %v935 = vmax.f32 %v893, 0.0
          %v936 = vmax.f32 %v898, 0.0
          %v937 = vmax.f32 %v901, 0.0
          %v938 = vmax.f32 %v906, 0.0
          %v939 = vmax.f32 %v909, 0.0
          %v940 = vmax.f32 %v914, 0.0
          %v941 = vmax.f32 %v917, 0.0
          %v942 = vmax.f32 %v922, 0.0
          %v943 = vmax.f32 %v925, 0.0
          %v944 = vpack.c.bf16 %v929, %v928
          %v945 = vpack.c.bf16 %v931, %v930
          %v946 = vpack.c.bf16 %v933, %v932
          %v947 = vpack.c.bf16 %v935, %v934
          %v948 = vpack.c.bf16 %v937, %v936
          %v949 = vpack.c.bf16 %v939, %v938
          %v950 = vpack.c.bf16 %v941, %v940
          %v951 = vpack.c.bf16 %v943, %v942
          %v952 = vld [vmem:[%s8] sm:$0xf]
          %v953 = vld [vmem:[%s8 + $0x4] sm:$0xf]
          %v954 = vld [vmem:[%s8 + $0x8] sm:$0xf]
          %v955 = vld [vmem:[%s8 + $0xc] sm:$0xf]
          %v956 = vld [vmem:[%s8 + $0x10] sm:$0xf]
          %v957 = vld [vmem:[%s8 + $0x14] sm:$0xf]
          %v958 = vld [vmem:[%s8 + $0x18] sm:$0xf]
          %v959 = vld [vmem:[%s8 + $0x1c] sm:$0xf]
          %v960 = vld [vmem:[%s8 + $0x20] sm:$0xf]
          %v961 = vld [vmem:[%s8 + $0x24] sm:$0xf]
          %v962 = vld [vmem:[%s8 + $0x28] sm:$0xf]
          %v963 = vld [vmem:[%s8 + $0x2c] sm:$0xf]
          %v964 = vld [vmem:[%s8 + $0x30] sm:$0xf]
          %v965 = vld [vmem:[%s8 + $0x34] sm:$0xf]
          %v966 = vld [vmem:[%s8 + $0x38] sm:$0xf]
          %v967 = vld [vmem:[%s8 + $0x3c] sm:$0xf]
          %v968 = vld [vmem:[%s9] sm:$0x1]
          %v970 = vlaneseq
          %v971 = vshrl.u32 %v970, 7
          %v972 = vsub.s32 0, %v971
          %v973 = vrot.slane %v968, %v972
          %v991 = vunpack.c.l.b16 %v952
          %v992 = vunpack.c.l.b16 %v953
          %v993 = vunpack.c.l.b16 %v954
          %v994 = vunpack.c.l.b16 %v955
          %v995 = vunpack.c.l.b16 %v956
          %v996 = vunpack.c.l.b16 %v957
          %v997 = vunpack.c.l.b16 %v958
          %v998 = vunpack.c.l.b16 %v959
          %v999 = vunpack.c.l.b16 %v960
          %v1000 = vunpack.c.l.b16 %v961
          %v1001 = vunpack.c.l.b16 %v962
          %v1002 = vunpack.c.l.b16 %v963
          %v1003 = vunpack.c.l.b16 %v964
          %v1004 = vunpack.c.l.b16 %v965
          %v1005 = vunpack.c.l.b16 %v966
          %v1006 = vunpack.c.l.b16 %v967
          %v1007 = vpack.c.b16 %v992, %v991
          %v1008 = vpack.c.b16 %v994, %v993
          %v1009 = vpack.c.b16 %v996, %v995
          %v1010 = vpack.c.b16 %v998, %v997
          %v1011 = vpack.c.b16 %v1000, %v999
          %v1012 = vpack.c.b16 %v1002, %v1001
          %v1013 = vpack.c.b16 %v1004, %v1003
          %v1014 = vpack.c.b16 %v1006, %v1005
          %1023 = vmatprep.subr.bf16.mxu0 0
          %1024 = vmatpush1.bf16.msra.mxu0 %v1007
          %1025 = vmatprep.subr.bf16.mxu0 0
          %1026 = vmatpush1.bf16.msra.mxu0 %v1008
          %1027 = vmatprep.subr.bf16.mxu0 0
          %1028 = vmatpush1.bf16.msra.mxu0 %v1009
          %1029 = vmatprep.subr.bf16.mxu0 0
          %1030 = vmatpush1.bf16.msra.mxu0 %v1010
          %1031 = vmatprep.subr.bf16.mxu0 0
          %1032 = vmatpush1.bf16.msra.mxu0 %v1011
          %1033 = vmatprep.subr.bf16.mxu0 0
          %1034 = vmatpush1.bf16.msra.mxu0 %v1012
          %1035 = vmatprep.subr.bf16.mxu0 0
          %1036 = vmatpush1.bf16.msra.mxu0 %v1013
          %1037 = vmatprep.subr.bf16.mxu0 0
          %1038 = vmatpush1.bf16.msra.mxu0 %v1014
          %1039 = vmatprep.subr.bf16.mxu0 0
          %1040 = vmatpush1.bf16.msra.mxu0 0
          %1041 = vmatprep.subr.bf16.mxu0 0
          %1042 = vmatpush1.bf16.msra.mxu0 0
          %1043 = vmatprep.subr.bf16.mxu0 0
          %1044 = vmatpush1.bf16.msra.mxu0 0
          %1045 = vmatprep.subr.bf16.mxu0 0
          %1046 = vmatpush1.bf16.msra.mxu0 0
          %1047 = vmatprep.subr.bf16.mxu0 0
          %1048 = vmatpush1.bf16.msra.mxu0 0
          %1049 = vmatprep.subr.bf16.mxu0 0
          %1050 = vmatpush1.bf16.msra.mxu0 0
          %1051 = vmatprep.subr.bf16.mxu0 0
          %1052 = vmatpush1.bf16.msra.mxu0 0
          %1053 = vmatprep.subr.bf16.mxu0 0
          %1054 = vmatpush1.bf16.msra.mxu0 0
          %1055 = vmatprep.mubr.bf16.mxu0 0
          %1056 = vmatmul.mubr.bf16.gmra.mrb[0].mxu0 %v944
          %v1057 = vpop.f32.mrb[0].mxu0
          %v1058 = vadd.f32 %v973, %v1057
          %v1059 = vpop.f32.mrb[0].mxu0
          %v1060 = vpop.f32.mrb[0].mxu0
          %v1061 = vadd.f32 %v973, %v1060
          %v1062 = vpop.f32.mrb[0].mxu0
          %1063 = vmatprep.mubr.bf16.mxu0 0
          %1064 = vmatmul.mubr.bf16.gmra.mrb[0].mxu0 %v945
          %v1065 = vpop.f32.mrb[0].mxu0
          %v1066 = vadd.f32 %v973, %v1065
          %v1067 = vpop.f32.mrb[0].mxu0
          %v1068 = vpop.f32.mrb[0].mxu0
          %v1069 = vadd.f32 %v973, %v1068
          %v1070 = vpop.f32.mrb[0].mxu0
          %1071 = vmatprep.mubr.bf16.mxu0 0
          %1072 = vmatmul.mubr.bf16.gmra.mrb[0].mxu0 %v946
          %v1073 = vpop.f32.mrb[0].mxu0
          %v1074 = vadd.f32 %v973, %v1073
          %v1075 = vpop.f32.mrb[0].mxu0
          %v1076 = vpop.f32.mrb[0].mxu0
          %v1077 = vadd.f32 %v973, %v1076
          %v1078 = vpop.f32.mrb[0].mxu0
          %1079 = vmatprep.mubr.bf16.mxu0 0
          %1080 = vmatmul.mubr.bf16.gmra.mrb[0].mxu0 %v947
          %v1081 = vpop.f32.mrb[0].mxu0
          %v1082 = vadd.f32 %v973, %v1081
          %v1083 = vpop.f32.mrb[0].mxu0
          %v1084 = vpop.f32.mrb[0].mxu0
          %v1085 = vadd.f32 %v973, %v1084
          %v1086 = vpop.f32.mrb[0].mxu0
          %1087 = vmatprep.mubr.bf16.mxu0 0
          %1088 = vmatmul.mubr.bf16.gmra.mrb[0].mxu0 %v948
          %v1089 = vpop.f32.mrb[0].mxu0
          %v1090 = vadd.f32 %v973, %v1089
          %v1091 = vpop.f32.mrb[0].mxu0
          %v1092 = vpop.f32.mrb[0].mxu0
          %v1093 = vadd.f32 %v973, %v1092
          %v1094 = vpop.f32.mrb[0].mxu0
          %1095 = vmatprep.mubr.bf16.mxu0 0
          %1096 = vmatmul.mubr.bf16.gmra.mrb[0].mxu0 %v949
          %v1097 = vpop.f32.mrb[0].mxu0
          %v1098 = vadd.f32 %v973, %v1097
          %v1099 = vpop.f32.mrb[0].mxu0
          %v1100 = vpop.f32.mrb[0].mxu0
          %v1101 = vadd.f32 %v973, %v1100
          %v1102 = vpop.f32.mrb[0].mxu0
          %1103 = vmatprep.mubr.bf16.mxu0 0
          %1104 = vmatmul.mubr.bf16.gmra.mrb[0].mxu0 %v950
          %v1105 = vpop.f32.mrb[0].mxu0
          %v1106 = vadd.f32 %v973, %v1105
          %v1107 = vpop.f32.mrb[0].mxu0
          %v1108 = vpop.f32.mrb[0].mxu0
          %v1109 = vadd.f32 %v973, %v1108
          %v1110 = vpop.f32.mrb[0].mxu0
          %1111 = vmatprep.mubr.bf16.mxu0 0
          %1112 = vmatmul.mubr.bf16.gmra.mrb[0].mxu0 %v951
          %v1113 = vpop.f32.mrb[0].mxu0
          %v1114 = vadd.f32 %v973, %v1113
          %v1115 = vpop.f32.mrb[0].mxu0
          %v1116 = vpop.f32.mrb[0].mxu0
          %v1117 = vadd.f32 %v973, %v1116
          %v1118 = vpop.f32.mrb[0].mxu0
          %1119 = vdwg.mxu0
          %v1120 = vpack.c.bf16 %v1061, %v1058
          %v1121 = vpack.c.bf16 %v1069, %v1066
          %v1122 = vpack.c.bf16 %v1077, %v1074
          %v1123 = vpack.c.bf16 %v1085, %v1082
          %v1124 = vpack.c.bf16 %v1093, %v1090
          %v1125 = vpack.c.bf16 %v1101, %v1098
          %v1126 = vpack.c.bf16 %v1109, %v1106
          %v1127 = vpack.c.bf16 %v1117, %v1114
          %v1136 = vunpack.c.l.b16 %v1120
          %v1137 = vunpack.c.h.b16 %v1120
          %v1138 = vunpack.c.l.b16 %v1121
          %v1139 = vunpack.c.h.b16 %v1121
          %v1140 = vunpack.c.l.b16 %v1122
          %v1141 = vunpack.c.h.b16 %v1122
          %v1142 = vunpack.c.l.b16 %v1123
          %v1143 = vunpack.c.h.b16 %v1123
          %v1144 = vunpack.c.l.b16 %v1124
          %v1145 = vunpack.c.h.b16 %v1124
          %v1146 = vunpack.c.l.b16 %v1125
          %v1147 = vunpack.c.h.b16 %v1125
          %v1148 = vunpack.c.l.b16 %v1126
          %v1149 = vunpack.c.h.b16 %v1126
          %v1150 = vunpack.c.l.b16 %v1127
          %v1151 = vunpack.c.h.b16 %v1127
          %v1152 = vpack.c.b16 %v1136, %v1136
          %v1153 = vpack.c.b16 %v1137, %v1137
          %v1154 = vpack.c.b16 %v1138, %v1138
          %v1155 = vpack.c.b16 %v1139, %v1139
          %v1156 = vpack.c.b16 %v1140, %v1140
          %v1157 = vpack.c.b16 %v1141, %v1141
          %v1158 = vpack.c.b16 %v1142, %v1142
          %v1159 = vpack.c.b16 %v1143, %v1143
          %v1160 = vpack.c.b16 %v1144, %v1144
          %v1161 = vpack.c.b16 %v1145, %v1145
          %v1162 = vpack.c.b16 %v1146, %v1146
          %v1163 = vpack.c.b16 %v1147, %v1147
          %v1164 = vpack.c.b16 %v1148, %v1148
          %v1165 = vpack.c.b16 %v1149, %v1149
          %v1166 = vpack.c.b16 %v1150, %v1150
          %v1167 = vpack.c.b16 %v1151, %v1151
          %1184 = vst [vmem:[%s624] sm:$0xf] %v1152
          %1185 = vst [vmem:[%s624 + $0x4] sm:$0xf] %v1153
          %1186 = vst [vmem:[%s624 + $0x8] sm:$0xf] %v1154
          %1187 = vst [vmem:[%s624 + $0xc] sm:$0xf] %v1155
          %1188 = vst [vmem:[%s624 + $0x10] sm:$0xf] %v1156
          %1189 = vst [vmem:[%s624 + $0x14] sm:$0xf] %v1157
          %1190 = vst [vmem:[%s624 + $0x18] sm:$0xf] %v1158
          %1191 = vst [vmem:[%s624 + $0x1c] sm:$0xf] %v1159
          %1192 = vst [vmem:[%s624 + $0x20] sm:$0xf] %v1160
          %1193 = vst [vmem:[%s624 + $0x24] sm:$0xf] %v1161
          %1194 = vst [vmem:[%s624 + $0x28] sm:$0xf] %v1162
          %1195 = vst [vmem:[%s624 + $0x2c] sm:$0xf] %v1163
          %1196 = vst [vmem:[%s624 + $0x30] sm:$0xf] %v1164
          %1197 = vst [vmem:[%s624 + $0x34] sm:$0xf] %v1165
          %1198 = vst [vmem:[%s624 + $0x38] sm:$0xf] %v1166
          %1199 = vst [vmem:[%s624 + $0x3c] sm:$0xf] %v1167
        $region84: #{tpu_custom_call.1} parent=67 // pred_fallthru
          _
        %s1200 = sld [smem:[#allocation5 + %s51]]
        %p1201 = scmp.lt.s32.totalorder %s52, %s1200
        // Predicated region
        $region85: #{tpu_custom_call.1} parent=67 // pred_check
          %p1202 = pneg %p1201
        $region86: #{tpu_custom_call.1} parent=67 // pred_check_branch
          %1204 = sbr.rel (%p1202) target = $region88
        $region87: #{tpu_custom_call.1} parent=67 // pred_region
          %v1205 = vld [vmem:[%s554] sm:$0xf]
          %v1206 = vld [vmem:[%s554 + $0x4] sm:$0xf]
          %v1207 = vld [vmem:[%s554 + $0x8] sm:$0xf]
          %v1208 = vld [vmem:[%s554 + $0xc] sm:$0xf]
          %v1209 = vld [vmem:[%s554 + $0x10] sm:$0xf]
          %v1210 = vld [vmem:[%s554 + $0x14] sm:$0xf]
          %v1211 = vld [vmem:[%s554 + $0x18] sm:$0xf]
          %v1212 = vld [vmem:[%s554 + $0x1c] sm:$0xf]
          %v1213 = vld [vmem:[%s554 + $0x20] sm:$0xf]
          %v1214 = vld [vmem:[%s554 + $0x24] sm:$0xf]
          %v1215 = vld [vmem:[%s554 + $0x28] sm:$0xf]
          %v1216 = vld [vmem:[%s554 + $0x2c] sm:$0xf]
          %v1217 = vld [vmem:[%s554 + $0x30] sm:$0xf]
          %v1218 = vld [vmem:[%s554 + $0x34] sm:$0xf]
          %v1219 = vld [vmem:[%s554 + $0x38] sm:$0xf]
          %v1220 = vld [vmem:[%s554 + $0x3c] sm:$0xf]
          %v1221 = vld [vmem:[%s554 + $0x40] sm:$0xf]
          %v1222 = vld [vmem:[%s554 + $0x44] sm:$0xf]
          %v1223 = vld [vmem:[%s554 + $0x48] sm:$0xf]
          %v1224 = vld [vmem:[%s554 + $0x4c] sm:$0xf]
          %v1225 = vld [vmem:[%s554 + $0x50] sm:$0xf]
          %v1226 = vld [vmem:[%s554 + $0x54] sm:$0xf]
          %v1227 = vld [vmem:[%s554 + $0x58] sm:$0xf]
          %v1228 = vld [vmem:[%s554 + $0x5c] sm:$0xf]
          %v1229 = vld [vmem:[%s554 + $0x60] sm:$0xf]
          %v1230 = vld [vmem:[%s554 + $0x64] sm:$0xf]
          %v1231 = vld [vmem:[%s554 + $0x68] sm:$0xf]
          %v1232 = vld [vmem:[%s554 + $0x6c] sm:$0xf]
          %v1233 = vld [vmem:[%s554 + $0x70] sm:$0xf]
          %v1234 = vld [vmem:[%s554 + $0x74] sm:$0xf]
          %v1235 = vld [vmem:[%s554 + $0x78] sm:$0xf]
          %v1236 = vld [vmem:[%s554 + $0x7c] sm:$0xf]
          %v1237 = vld [vmem:[#allocation9] sm:$0xf]
          %v1238 = vld [vmem:[#allocation9 + $0x4] sm:$0xf]
          %v1239 = vld [vmem:[#allocation9 + $0x8] sm:$0xf]
          %v1240 = vld [vmem:[#allocation9 + $0xc] sm:$0xf]
          %v1241 = vld [vmem:[#allocation9 + $0x10] sm:$0xf]
          %v1242 = vld [vmem:[#allocation9 + $0x14] sm:$0xf]
          %v1243 = vld [vmem:[#allocation9 + $0x18] sm:$0xf]
          %v1244 = vld [vmem:[#allocation9 + $0x1c] sm:$0xf]
          %v1245 = vld [vmem:[#allocation9 + $0x20] sm:$0xf]
          %v1246 = vld [vmem:[#allocation9 + $0x24] sm:$0xf]
          %v1247 = vld [vmem:[#allocation9 + $0x28] sm:$0xf]
          %v1248 = vld [vmem:[#allocation9 + $0x2c] sm:$0xf]
          %v1249 = vld [vmem:[#allocation9 + $0x30] sm:$0xf]
          %v1250 = vld [vmem:[#allocation9 + $0x34] sm:$0xf]
          %v1251 = vld [vmem:[#allocation9 + $0x38] sm:$0xf]
          %v1252 = vld [vmem:[#allocation9 + $0x3c] sm:$0xf]
          %v1253 = vld [vmem:[%s11] sm:$0x1]
          %v1255 = vlaneseq
          %v1256 = vshrl.u32 %v1255, 7
          %v1257 = vsub.s32 0, %v1256
          %v1258 = vrot.slane %v1253, %v1257
          %v1292 = vunpack.c.l.b16 %v1205
          %v1293 = vunpack.c.l.b16 %v1206
          %v1294 = vunpack.c.l.b16 %v1207
          %v1295 = vunpack.c.l.b16 %v1208
          %v1296 = vunpack.c.l.b16 %v1209
          %v1297 = vunpack.c.l.b16 %v1210
          %v1298 = vunpack.c.l.b16 %v1211
          %v1299 = vunpack.c.l.b16 %v1212
          %v1300 = vunpack.c.l.b16 %v1213
          %v1301 = vunpack.c.l.b16 %v1214
          %v1302 = vunpack.c.l.b16 %v1215
          %v1303 = vunpack.c.l.b16 %v1216
          %v1304 = vunpack.c.l.b16 %v1217
          %v1305 = vunpack.c.l.b16 %v1218
          %v1306 = vunpack.c.l.b16 %v1219
          %v1307 = vunpack.c.l.b16 %v1220
          %v1308 = vunpack.c.l.b16 %v1221
          %v1309 = vunpack.c.l.b16 %v1222
          %v1310 = vunpack.c.l.b16 %v1223
          %v1311 = vunpack.c.l.b16 %v1224
          %v1312 = vunpack.c.l.b16 %v1225
          %v1313 = vunpack.c.l.b16 %v1226
          %v1314 = vunpack.c.l.b16 %v1227
          %v1315 = vunpack.c.l.b16 %v1228
          %v1316 = vunpack.c.l.b16 %v1229
          %v1317 = vunpack.c.l.b16 %v1230
          %v1318 = vunpack.c.l.b16 %v1231
          %v1319 = vunpack.c.l.b16 %v1232
          %v1320 = vunpack.c.l.b16 %v1233
          %v1321 = vunpack.c.l.b16 %v1234
          %v1322 = vunpack.c.l.b16 %v1235
          %v1323 = vunpack.c.l.b16 %v1236
          %v1324 = vpack.c.b16 %v1293, %v1292
          %v1325 = vpack.c.b16 %v1295, %v1294
          %v1326 = vpack.c.b16 %v1297, %v1296
          %v1327 = vpack.c.b16 %v1299, %v1298
          %v1328 = vpack.c.b16 %v1301, %v1300
          %v1329 = vpack.c.b16 %v1303, %v1302
          %v1330 = vpack.c.b16 %v1305, %v1304
          %v1331 = vpack.c.b16 %v1307, %v1306
          %v1332 = vpack.c.b16 %v1309, %v1308
          %v1333 = vpack.c.b16 %v1311, %v1310
          %v1334 = vpack.c.b16 %v1313, %v1312
          %v1335 = vpack.c.b16 %v1315, %v1314
          %v1336 = vpack.c.b16 %v1317, %v1316
          %v1337 = vpack.c.b16 %v1319, %v1318
          %v1338 = vpack.c.b16 %v1321, %v1320
          %v1339 = vpack.c.b16 %v1323, %v1322
          %v1372 = vunpack.c.l.b16 %v1237
          %v1373 = vunpack.c.l.b16 %v1238
          %v1374 = vunpack.c.l.b16 %v1239
          %v1375 = vunpack.c.l.b16 %v1240
          %v1376 = vunpack.c.l.b16 %v1241
          %v1377 = vunpack.c.l.b16 %v1242
          %v1378 = vunpack.c.l.b16 %v1243
          %v1379 = vunpack.c.l.b16 %v1244
          %v1380 = vunpack.c.l.b16 %v1245
          %v1381 = vunpack.c.l.b16 %v1246
          %v1382 = vunpack.c.l.b16 %v1247
          %v1383 = vunpack.c.l.b16 %v1248
          %v1384 = vunpack.c.l.b16 %v1249
          %v1385 = vunpack.c.l.b16 %v1250
          %v1386 = vunpack.c.l.b16 %v1251
          %v1387 = vunpack.c.l.b16 %v1252
          %v1388 = vpack.c.b16 %v1373, %v1372
          %v1389 = vpack.c.b16 %v1375, %v1374
          %v1390 = vpack.c.b16 %v1377, %v1376
          %v1391 = vpack.c.b16 %v1379, %v1378
          %v1392 = vpack.c.b16 %v1381, %v1380
          %v1393 = vpack.c.b16 %v1383, %v1382
          %v1394 = vpack.c.b16 %v1385, %v1384
          %v1395 = vpack.c.b16 %v1387, %v1386
          %1404 = vmatprep.subr.bf16.mxu0 0
          %1405 = vmatpush1.bf16.msra.mxu0 %v1388
          %1406 = vmatprep.subr.bf16.mxu0 0
          %1407 = vmatpush1.bf16.msra.mxu0 %v1389
          %1408 = vmatprep.subr.bf16.mxu0 0
          %1409 = vmatpush1.bf16.msra.mxu0 %v1390
          %1410 = vmatprep.subr.bf16.mxu0 0
          %1411 = vmatpush1.bf16.msra.mxu0 %v1391
          %1412 = vmatprep.subr.bf16.mxu0 0
          %1413 = vmatpush1.bf16.msra.mxu0 %v1392
          %1414 = vmatprep.subr.bf16.mxu0 0
          %1415 = vmatpush1.bf16.msra.mxu0 %v1393
          %1416 = vmatprep.subr.bf16.mxu0 0
          %1417 = vmatpush1.bf16.msra.mxu0 %v1394
          %1418 = vmatprep.subr.bf16.mxu0 0
          %1419 = vmatpush1.bf16.msra.mxu0 %v1395
          %1420 = vmatprep.subr.bf16.mxu0 0
          %1421 = vmatpush1.bf16.msra.mxu0 0
          %1422 = vmatprep.subr.bf16.mxu0 0
          %1423 = vmatpush1.bf16.msra.mxu0 0
          %1424 = vmatprep.subr.bf16.mxu0 0
          %1425 = vmatpush1.bf16.msra.mxu0 0
          %1426 = vmatprep.subr.bf16.mxu0 0
          %1427 = vmatpush1.bf16.msra.mxu0 0
          %1428 = vmatprep.subr.bf16.mxu0 0
          %1429 = vmatpush1.bf16.msra.mxu0 0
          %1430 = vmatprep.subr.bf16.mxu0 0
          %1431 = vmatpush1.bf16.msra.mxu0 0
          %1432 = vmatprep.subr.bf16.mxu0 0
          %1433 = vmatpush1.bf16.msra.mxu0 0
          %1434 = vmatprep.subr.bf16.mxu0 0
          %1435 = vmatpush1.bf16.msra.mxu0 0
          %1436 = vmatprep.mubr.bf16.mxu0 0
          %1437 = vmatmul.mubr.bf16.gmra.mrb[0].mxu0 %v1324
          %v1438 = vpop.f32.mrb[0].mxu0
          %v1439 = vadd.f32 %v1258, %v1438
          %v1440 = vpop.f32.mrb[0].mxu0
          %v1441 = vpop.f32.mrb[0].mxu0
          %v1442 = vadd.f32 %v1258, %v1441
          %v1443 = vpop.f32.mrb[0].mxu0
          %1444 = vmatprep.mubr.bf16.mxu0 0
          %1445 = vmatmul.mubr.bf16.gmra.mrb[0].mxu0 %v1325
          %v1446 = vpop.f32.mrb[0].mxu0
          %v1447 = vadd.f32 %v1258, %v1446
          %v1448 = vpop.f32.mrb[0].mxu0
          %v1449 = vpop.f32.mrb[0].mxu0
          %v1450 = vadd.f32 %v1258, %v1449
          %v1451 = vpop.f32.mrb[0].mxu0
          %1452 = vmatprep.mubr.bf16.mxu0 0
          %1453 = vmatmul.mubr.bf16.gmra.mrb[0].mxu0 %v1326
          %v1454 = vpop.f32.mrb[0].mxu0
          %v1455 = vadd.f32 %v1258, %v1454
          %v1456 = vpop.f32.mrb[0].mxu0
          %v1457 = vpop.f32.mrb[0].mxu0
          %v1458 = vadd.f32 %v1258, %v1457
          %v1459 = vpop.f32.mrb[0].mxu0
          %1460 = vmatprep.mubr.bf16.mxu0 0
          %1461 = vmatmul.mubr.bf16.gmra.mrb[0].mxu0 %v1327
          %v1462 = vpop.f32.mrb[0].mxu0
          %v1463 = vadd.f32 %v1258, %v1462
          %v1464 = vpop.f32.mrb[0].mxu0
          %v1465 = vpop.f32.mrb[0].mxu0
          %v1466 = vadd.f32 %v1258, %v1465
          %v1467 = vpop.f32.mrb[0].mxu0
          %1468 = vmatprep.mubr.bf16.mxu0 0
          %1469 = vmatmul.mubr.bf16.gmra.mrb[0].mxu0 %v1328
          %v1470 = vpop.f32.mrb[0].mxu0
          %v1471 = vadd.f32 %v1258, %v1470
          %v1472 = vpop.f32.mrb[0].mxu0
          %v1473 = vpop.f32.mrb[0].mxu0
          %v1474 = vadd.f32 %v1258, %v1473
          %v1475 = vpop.f32.mrb[0].mxu0
          %1476 = vmatprep.mubr.bf16.mxu0 0
          %1477 = vmatmul.mubr.bf16.gmra.mrb[0].mxu0 %v1329
          %v1478 = vpop.f32.mrb[0].mxu0
          %v1479 = vadd.f32 %v1258, %v1478
          %v1480 = vpop.f32.mrb[0].mxu0
          %v1481 = vpop.f32.mrb[0].mxu0
          %v1482 = vadd.f32 %v1258, %v1481
          %v1483 = vpop.f32.mrb[0].mxu0
          %1484 = vmatprep.mubr.bf16.mxu0 0
          %1485 = vmatmul.mubr.bf16.gmra.mrb[0].mxu0 %v1330
          %v1486 = vpop.f32.mrb[0].mxu0
          %v1487 = vadd.f32 %v1258, %v1486
          %v1488 = vpop.f32.mrb[0].mxu0
          %v1489 = vpop.f32.mrb[0].mxu0
          %v1490 = vadd.f32 %v1258, %v1489
          %v1491 = vpop.f32.mrb[0].mxu0
          %1492 = vmatprep.mubr.bf16.mxu0 0
          %1493 = vmatmul.mubr.bf16.gmra.mrb[0].mxu0 %v1331
          %v1494 = vpop.f32.mrb[0].mxu0
          %v1495 = vadd.f32 %v1258, %v1494
          %v1496 = vpop.f32.mrb[0].mxu0
          %v1497 = vpop.f32.mrb[0].mxu0
          %v1498 = vadd.f32 %v1258, %v1497
          %v1499 = vpop.f32.mrb[0].mxu0
          %1500 = vmatprep.mubr.bf16.mxu0 0
          %1501 = vmatmul.mubr.bf16.gmra.mrb[0].mxu0 %v1332
          %v1502 = vpop.f32.mrb[0].mxu0
          %v1503 = vadd.f32 %v1258, %v1502
          %v1504 = vpop.f32.mrb[0].mxu0
          %v1505 = vpop.f32.mrb[0].mxu0
          %v1506 = vadd.f32 %v1258, %v1505
          %v1507 = vpop.f32.mrb[0].mxu0
          %1508 = vmatprep.mubr.bf16.mxu0 0
          %1509 = vmatmul.mubr.bf16.gmra.mrb[0].mxu0 %v1333
          %v1510 = vpop.f32.mrb[0].mxu0
          %v1511 = vadd.f32 %v1258, %v1510
          %v1512 = vpop.f32.mrb[0].mxu0
          %v1513 = vpop.f32.mrb[0].mxu0
          %v1514 = vadd.f32 %v1258, %v1513
          %v1515 = vpop.f32.mrb[0].mxu0
          %1516 = vmatprep.mubr.bf16.mxu0 0
          %1517 = vmatmul.mubr.bf16.gmra.mrb[0].mxu0 %v1334
          %v1518 = vpop.f32.mrb[0].mxu0
          %v1519 = vadd.f32 %v1258, %v1518
          %v1520 = vpop.f32.mrb[0].mxu0
          %v1521 = vpop.f32.mrb[0].mxu0
          %v1522 = vadd.f32 %v1258, %v1521
          %v1523 = vpop.f32.mrb[0].mxu0
          %1524 = vmatprep.mubr.bf16.mxu0 0
          %1525 = vmatmul.mubr.bf16.gmra.mrb[0].mxu0 %v1335
          %v1526 = vpop.f32.mrb[0].mxu0
          %v1527 = vadd.f32 %v1258, %v1526
          %v1528 = vpop.f32.mrb[0].mxu0
          %v1529 = vpop.f32.mrb[0].mxu0
          %v1530 = vadd.f32 %v1258, %v1529
          %v1531 = vpop.f32.mrb[0].mxu0
          %1532 = vmatprep.mubr.bf16.mxu0 0
          %1533 = vmatmul.mubr.bf16.gmra.mrb[0].mxu0 %v1336
          %v1534 = vpop.f32.mrb[0].mxu0
          %v1535 = vadd.f32 %v1258, %v1534
          %v1536 = vpop.f32.mrb[0].mxu0
          %v1537 = vpop.f32.mrb[0].mxu0
          %v1538 = vadd.f32 %v1258, %v1537
          %v1539 = vpop.f32.mrb[0].mxu0
          %1540 = vmatprep.mubr.bf16.mxu0 0
          %1541 = vmatmul.mubr.bf16.gmra.mrb[0].mxu0 %v1337
          %v1542 = vpop.f32.mrb[0].mxu0
          %v1543 = vadd.f32 %v1258, %v1542
          %v1544 = vpop.f32.mrb[0].mxu0
          %v1545 = vpop.f32.mrb[0].mxu0
          %v1546 = vadd.f32 %v1258, %v1545
          %v1547 = vpop.f32.mrb[0].mxu0
          %1548 = vmatprep.mubr.bf16.mxu0 0
          %1549 = vmatmul.mubr.bf16.gmra.mrb[0].mxu0 %v1338
          %v1550 = vpop.f32.mrb[0].mxu0
          %v1551 = vadd.f32 %v1258, %v1550
          %v1552 = vpop.f32.mrb[0].mxu0
          %v1553 = vpop.f32.mrb[0].mxu0
          %v1554 = vadd.f32 %v1258, %v1553
          %v1555 = vpop.f32.mrb[0].mxu0
          %1556 = vmatprep.mubr.bf16.mxu0 0
          %1557 = vmatmul.mubr.bf16.gmra.mrb[0].mxu0 %v1339
          %v1558 = vpop.f32.mrb[0].mxu0
          %v1559 = vadd.f32 %v1258, %v1558
          %v1560 = vpop.f32.mrb[0].mxu0
          %v1561 = vpop.f32.mrb[0].mxu0
          %v1562 = vadd.f32 %v1258, %v1561
          %v1563 = vpop.f32.mrb[0].mxu0
          %1564 = vdwg.mxu0
          %v1565 = vmax.f32 %v1439, 0.0
          %v1566 = vmax.f32 %v1442, 0.0
          %v1567 = vmax.f32 %v1447, 0.0
          %v1568 = vmax.f32 %v1450, 0.0
          %v1569 = vmax.f32 %v1455, 0.0
          %v1570 = vmax.f32 %v1458, 0.0
          %v1571 = vmax.f32 %v1463, 0.0
          %v1572 = vmax.f32 %v1466, 0.0
          %v1573 = vmax.f32 %v1471, 0.0
          %v1574 = vmax.f32 %v1474, 0.0
          %v1575 = vmax.f32 %v1479, 0.0
          %v1576 = vmax.f32 %v1482, 0.0
          %v1577 = vmax.f32 %v1487, 0.0
          %v1578 = vmax.f32 %v1490, 0.0
          %v1579 = vmax.f32 %v1495, 0.0
          %v1580 = vmax.f32 %v1498, 0.0
          %v1581 = vmax.f32 %v1503, 0.0
          %v1582 = vmax.f32 %v1506, 0.0
          %v1583 = vmax.f32 %v1511, 0.0
          %v1584 = vmax.f32 %v1514, 0.0
          %v1585 = vmax.f32 %v1519, 0.0
          %v1586 = vmax.f32 %v1522, 0.0
          %v1587 = vmax.f32 %v1527, 0.0
          %v1588 = vmax.f32 %v1530, 0.0
          %v1589 = vmax.f32 %v1535, 0.0
          %v1590 = vmax.f32 %v1538, 0.0
          %v1591 = vmax.f32 %v1543, 0.0
          %v1592 = vmax.f32 %v1546, 0.0
          %v1593 = vmax.f32 %v1551, 0.0
          %v1594 = vmax.f32 %v1554, 0.0
          %v1595 = vmax.f32 %v1559, 0.0
          %v1596 = vmax.f32 %v1562, 0.0
          %v1597 = vpack.c.bf16 %v1566, %v1565
          %v1598 = vpack.c.bf16 %v1568, %v1567
          %v1599 = vpack.c.bf16 %v1570, %v1569
          %v1600 = vpack.c.bf16 %v1572, %v1571
          %v1601 = vpack.c.bf16 %v1574, %v1573
          %v1602 = vpack.c.bf16 %v1576, %v1575
          %v1603 = vpack.c.bf16 %v1578, %v1577
          %v1604 = vpack.c.bf16 %v1580, %v1579
          %v1605 = vpack.c.bf16 %v1582, %v1581
          %v1606 = vpack.c.bf16 %v1584, %v1583
          %v1607 = vpack.c.bf16 %v1586, %v1585
          %v1608 = vpack.c.bf16 %v1588, %v1587
          %v1609 = vpack.c.bf16 %v1590, %v1589
          %v1610 = vpack.c.bf16 %v1592, %v1591
          %v1611 = vpack.c.bf16 %v1594, %v1593
          %v1612 = vpack.c.bf16 %v1596, %v1595
          %v1613 = vlaneseq
          %v1614 = vshrl.u32 %v1613, 7
          %v1615 = vadd.s32 %v1614, 8
          %v1616 = vadd.s32 %v1614, 16
          %v1617 = vadd.s32 %v1614, 24
          %v1618 = vadd.s32 %v1614, 32
          %v1619 = vadd.s32 %v1614, 40
          %v1620 = vadd.s32 %v1614, 48
          %v1621 = vadd.s32 %v1614, 56
          %v1622 = vadd.s32 %v1614, 64
          %v1623 = vadd.s32 %v1614, 72
          %v1624 = vadd.s32 %v1614, 80
          %v1625 = vadd.s32 %v1614, 88
          %v1626 = vadd.s32 %v1614, 96
          %v1627 = vadd.s32 %v1614, 104
          %v1628 = vadd.s32 %v1614, 112
          %v1629 = vadd.s32 %v1614, 120
          %v1630 = vld [vmem:[%s658] sm:$0x3]
          %s1631 = smul.u32 %s51, 128
          %v1632 = vstv %s1631
          %v1633 = vsub.s32 %v1630, %v1632
          %v1634 = vlaneseq
          %v1635 = vshrl.u32 %v1634, 7
          %v1636 = vsub.s32 0, %v1635
          %v1637 = vrot.slane %v1633, %v1636
          %v1638 = vlaneseq
          %v1639 = vshrl.u32 %v1638, 7
          %v1640 = vsub.s32 1, %v1639
          %v1641 = vrot.slane %v1633, %v1640
          %vm1642 = vcmp.eq.s32.totalorder %v1614, %v1637
          %vm1643 = vcmp.eq.s32.totalorder %v1614, %v1641
          %vm1644 = vcmp.eq.s32.totalorder %v1615, %v1637
          %vm1645 = vcmp.eq.s32.totalorder %v1615, %v1641
          %vm1646 = vcmp.eq.s32.totalorder %v1616, %v1637
          %vm1647 = vcmp.eq.s32.totalorder %v1616, %v1641
          %vm1648 = vcmp.eq.s32.totalorder %v1617, %v1637
          %vm1649 = vcmp.eq.s32.totalorder %v1617, %v1641
          %vm1650 = vcmp.eq.s32.totalorder %v1618, %v1637
          %vm1651 = vcmp.eq.s32.totalorder %v1618, %v1641
          %vm1652 = vcmp.eq.s32.totalorder %v1619, %v1637
          %vm1653 = vcmp.eq.s32.totalorder %v1619, %v1641
          %vm1654 = vcmp.eq.s32.totalorder %v1620, %v1637
          %vm1655 = vcmp.eq.s32.totalorder %v1620, %v1641
          %vm1656 = vcmp.eq.s32.totalorder %v1621, %v1637
          %vm1657 = vcmp.eq.s32.totalorder %v1621, %v1641
          %vm1658 = vcmp.eq.s32.totalorder %v1622, %v1637
          %vm1659 = vcmp.eq.s32.totalorder %v1622, %v1641
          %vm1660 = vcmp.eq.s32.totalorder %v1623, %v1637
          %vm1661 = vcmp.eq.s32.totalorder %v1623, %v1641
          %vm1662 = vcmp.eq.s32.totalorder %v1624, %v1637
          %vm1663 = vcmp.eq.s32.totalorder %v1624, %v1641
          %vm1664 = vcmp.eq.s32.totalorder %v1625, %v1637
          %vm1665 = vcmp.eq.s32.totalorder %v1625, %v1641
          %vm1666 = vcmp.eq.s32.totalorder %v1626, %v1637
          %vm1667 = vcmp.eq.s32.totalorder %v1626, %v1641
          %vm1668 = vcmp.eq.s32.totalorder %v1627, %v1637
          %vm1669 = vcmp.eq.s32.totalorder %v1627, %v1641
          %vm1670 = vcmp.eq.s32.totalorder %v1628, %v1637
          %vm1671 = vcmp.eq.s32.totalorder %v1628, %v1641
          %vm1672 = vcmp.eq.s32.totalorder %v1629, %v1637
          %vm1673 = vcmp.eq.s32.totalorder %v1629, %v1641
          %v1674 = vsel %vm1642, 1, 0
          %v1675 = vsel %vm1643, 1, 0
          %v1676 = vsel %vm1644, 1, 0
          %v1677 = vsel %vm1645, 1, 0
          %v1678 = vsel %vm1646, 1, 0
          %v1679 = vsel %vm1647, 1, 0
          %v1680 = vsel %vm1648, 1, 0
          %v1681 = vsel %vm1649, 1, 0
          %v1682 = vsel %vm1650, 1, 0
          %v1683 = vsel %vm1651, 1, 0
          %v1684 = vsel %vm1652, 1, 0
          %v1685 = vsel %vm1653, 1, 0
          %v1686 = vsel %vm1654, 1, 0
          %v1687 = vsel %vm1655, 1, 0
          %v1688 = vsel %vm1656, 1, 0
          %v1689 = vsel %vm1657, 1, 0
          %v1690 = vsel %vm1658, 1, 0
          %v1691 = vsel %vm1659, 1, 0
          %v1692 = vsel %vm1660, 1, 0
          %v1693 = vsel %vm1661, 1, 0
          %v1694 = vsel %vm1662, 1, 0
          %v1695 = vsel %vm1663, 1, 0
          %v1696 = vsel %vm1664, 1, 0
          %v1697 = vsel %vm1665, 1, 0
          %v1698 = vsel %vm1666, 1, 0
          %v1699 = vsel %vm1667, 1, 0
          %v1700 = vsel %vm1668, 1, 0
          %v1701 = vsel %vm1669, 1, 0
          %v1702 = vsel %vm1670, 1, 0
          %v1703 = vsel %vm1671, 1, 0
          %v1704 = vsel %vm1672, 1, 0
          %v1705 = vsel %vm1673, 1, 0
          %v1706 = vcvt.s32.f32 %v1674
          %v1707 = vcvt.s32.f32 %v1675
          %v1708 = vcvt.s32.f32 %v1676
          %v1709 = vcvt.s32.f32 %v1677
          %v1710 = vcvt.s32.f32 %v1678
          %v1711 = vcvt.s32.f32 %v1679
          %v1712 = vcvt.s32.f32 %v1680
          %v1713 = vcvt.s32.f32 %v1681
          %v1714 = vcvt.s32.f32 %v1682
          %v1715 = vcvt.s32.f32 %v1683
          %v1716 = vcvt.s32.f32 %v1684
          %v1717 = vcvt.s32.f32 %v1685
          %v1718 = vcvt.s32.f32 %v1686
          %v1719 = vcvt.s32.f32 %v1687
          %v1720 = vcvt.s32.f32 %v1688
          %v1721 = vcvt.s32.f32 %v1689
          %v1722 = vcvt.s32.f32 %v1690
          %v1723 = vcvt.s32.f32 %v1691
          %v1724 = vcvt.s32.f32 %v1692
          %v1725 = vcvt.s32.f32 %v1693
          %v1726 = vcvt.s32.f32 %v1694
          %v1727 = vcvt.s32.f32 %v1695
          %v1728 = vcvt.s32.f32 %v1696
          %v1729 = vcvt.s32.f32 %v1697
          %v1730 = vcvt.s32.f32 %v1698
          %v1731 = vcvt.s32.f32 %v1699
          %v1732 = vcvt.s32.f32 %v1700
          %v1733 = vcvt.s32.f32 %v1701
          %v1734 = vcvt.s32.f32 %v1702
          %v1735 = vcvt.s32.f32 %v1703
          %v1736 = vcvt.s32.f32 %v1704
          %v1737 = vcvt.s32.f32 %v1705
          %v1738 = vpack.c.bf16 %v1708, %v1706
          %v1739 = vpack.c.bf16 %v1709, %v1707
          %v1740 = vpack.c.bf16 %v1712, %v1710
          %v1741 = vpack.c.bf16 %v1713, %v1711
          %v1742 = vpack.c.bf16 %v1716, %v1714
          %v1743 = vpack.c.bf16 %v1717, %v1715
          %v1744 = vpack.c.bf16 %v1720, %v1718
          %v1745 = vpack.c.bf16 %v1721, %v1719
          %v1746 = vpack.c.bf16 %v1724, %v1722
          %v1747 = vpack.c.bf16 %v1725, %v1723
          %v1748 = vpack.c.bf16 %v1728, %v1726
          %v1749 = vpack.c.bf16 %v1729, %v1727
          %v1750 = vpack.c.bf16 %v1732, %v1730
          %v1751 = vpack.c.bf16 %v1733, %v1731
          %v1752 = vpack.c.bf16 %v1736, %v1734
          %v1753 = vpack.c.bf16 %v1737, %v1735
          %v1754 = vld [vmem:[#allocation2] sm:$0xff]
          %v1755 = vld [vmem:[#allocation2 + $0x8] sm:$0xff]
          %v1756 = vld [vmem:[#allocation2 + $0x10] sm:$0xff]
          %v1757 = vld [vmem:[#allocation2 + $0x18] sm:$0xff]
          %v1758 = vld [vmem:[#allocation2 + $0x20] sm:$0xff]
          %v1759 = vld [vmem:[#allocation2 + $0x28] sm:$0xff]
          %v1760 = vld [vmem:[#allocation2 + $0x30] sm:$0xff]
          %v1761 = vld [vmem:[#allocation2 + $0x38] sm:$0xff]
          %v1762 = vld [vmem:[#allocation2 + $0x40] sm:$0xff]
          %v1763 = vld [vmem:[#allocation2 + $0x48] sm:$0xff]
          %v1764 = vld [vmem:[#allocation2 + $0x50] sm:$0xff]
          %v1765 = vld [vmem:[#allocation2 + $0x58] sm:$0xff]
          %v1766 = vld [vmem:[#allocation2 + $0x60] sm:$0xff]
          %v1767 = vld [vmem:[#allocation2 + $0x68] sm:$0xff]
          %v1768 = vld [vmem:[#allocation2 + $0x70] sm:$0xff]
          %v1769 = vld [vmem:[#allocation2 + $0x78] sm:$0xff]
          %1770 = vmatprep.subr.bf16.mxu0 0
          %1771 = vmatpush1.bf16.msra.mxu0 %v1597
          %1772 = vmatprep.subr.bf16.mxu0 0
          %1773 = vmatpush1.bf16.msra.mxu0 %v1598
          %1774 = vmatprep.subr.bf16.mxu0 0
          %1775 = vmatpush1.bf16.msra.mxu0 %v1599
          %1776 = vmatprep.subr.bf16.mxu0 0
          %1777 = vmatpush1.bf16.msra.mxu0 %v1600
          %1778 = vmatprep.subr.bf16.mxu0 0
          %1779 = vmatpush1.bf16.msra.mxu0 %v1601
          %1780 = vmatprep.subr.bf16.mxu0 0
          %1781 = vmatpush1.bf16.msra.mxu0 %v1602
          %1782 = vmatprep.subr.bf16.mxu0 0
          %1783 = vmatpush1.bf16.msra.mxu0 %v1603
          %1784 = vmatprep.subr.bf16.mxu0 0
          %1785 = vmatpush1.bf16.msra.mxu0 %v1604
          %1786 = vmatprep.subr.bf16.mxu0 0
          %1787 = vmatpush1.bf16.msra.mxu0 %v1605
          %1788 = vmatprep.subr.bf16.mxu0 0
          %1789 = vmatpush1.bf16.msra.mxu0 %v1606
          %1790 = vmatprep.subr.bf16.mxu0 0
          %1791 = vmatpush1.bf16.msra.mxu0 %v1607
          %1792 = vmatprep.subr.bf16.mxu0 0
          %1793 = vmatpush1.bf16.msra.mxu0 %v1608
          %1794 = vmatprep.subr.bf16.mxu0 0
          %1795 = vmatpush1.bf16.msra.mxu0 %v1609
          %1796 = vmatprep.subr.bf16.mxu0 0
          %1797 = vmatpush1.bf16.msra.mxu0 %v1610
          %1798 = vmatprep.subr.bf16.mxu0 0
          %1799 = vmatpush1.bf16.msra.mxu0 %v1611
          %1800 = vmatprep.subr.bf16.mxu0 0
          %1801 = vmatpush1.bf16.msra.mxu0 %v1612
          %1802 = vmatprep.mubr.bf16.mxu0 %v1739
          %1803 = vmatmul.mubr.bf16.gmra.mrb[0].mxu0 %v1738
          %v1804 = vpop.f32.mrb[0].mxu0
          %v1805 = vadd.f32 0.0, %v1804
          %v1806 = vpop.f32.mrb[0].mxu0
          %v1807 = vpop.f32.mrb[0].mxu0
          %v1808 = vadd.f32 0.0, %v1807
          %v1809 = vpop.f32.mrb[0].mxu0
          %1810 = vmatprep.mubr.bf16.mxu0 %v1741
          %1811 = vmatmul.mubr.bf16.gmra.mrb[0].mxu0 %v1740
          %v1812 = vpop.f32.mrb[0].mxu0
          %v1813 = vadd.f32 0.0, %v1812
          %v1814 = vpop.f32.mrb[0].mxu0
          %v1815 = vpop.f32.mrb[0].mxu0
          %v1816 = vadd.f32 0.0, %v1815
          %v1817 = vpop.f32.mrb[0].mxu0
          %1818 = vmatprep.mubr.bf16.mxu0 %v1743
          %1819 = vmatmul.mubr.bf16.gmra.mrb[0].mxu0 %v1742
          %v1820 = vpop.f32.mrb[0].mxu0
          %v1821 = vadd.f32 0.0, %v1820
          %v1822 = vpop.f32.mrb[0].mxu0
          %v1823 = vpop.f32.mrb[0].mxu0
          %v1824 = vadd.f32 0.0, %v1823
          %v1825 = vpop.f32.mrb[0].mxu0
          %1826 = vmatprep.mubr.bf16.mxu0 %v1745
          %1827 = vmatmul.mubr.bf16.gmra.mrb[0].mxu0 %v1744
          %v1828 = vpop.f32.mrb[0].mxu0
          %v1829 = vadd.f32 0.0, %v1828
          %v1830 = vpop.f32.mrb[0].mxu0
          %v1831 = vpop.f32.mrb[0].mxu0
          %v1832 = vadd.f32 0.0, %v1831
          %v1833 = vpop.f32.mrb[0].mxu0
          %1834 = vmatprep.mubr.bf16.mxu0 %v1747
          %1835 = vmatmul.mubr.bf16.gmra.mrb[0].mxu0 %v1746
          %v1836 = vpop.f32.mrb[0].mxu0
          %v1837 = vadd.f32 0.0, %v1836
          %v1838 = vpop.f32.mrb[0].mxu0
          %v1839 = vpop.f32.mrb[0].mxu0
          %v1840 = vadd.f32 0.0, %v1839
          %v1841 = vpop.f32.mrb[0].mxu0
          %1842 = vmatprep.mubr.bf16.mxu0 %v1749
          %1843 = vmatmul.mubr.bf16.gmra.mrb[0].mxu0 %v1748
          %v1844 = vpop.f32.mrb[0].mxu0
          %v1845 = vadd.f32 0.0, %v1844
          %v1846 = vpop.f32.mrb[0].mxu0
          %v1847 = vpop.f32.mrb[0].mxu0
          %v1848 = vadd.f32 0.0, %v1847
          %v1849 = vpop.f32.mrb[0].mxu0
          %1850 = vmatprep.mubr.bf16.mxu0 %v1751
          %1851 = vmatmul.mubr.bf16.gmra.mrb[0].mxu0 %v1750
          %v1852 = vpop.f32.mrb[0].mxu0
          %v1853 = vadd.f32 0.0, %v1852
          %v1854 = vpop.f32.mrb[0].mxu0
          %v1855 = vpop.f32.mrb[0].mxu0
          %v1856 = vadd.f32 0.0, %v1855
          %v1857 = vpop.f32.mrb[0].mxu0
          %1858 = vmatprep.mubr.bf16.mxu0 %v1753
          %1859 = vmatmul.mubr.bf16.gmra.mrb[0].mxu0 %v1752
          %v1860 = vpop.f32.mrb[0].mxu0
          %v1861 = vadd.f32 0.0, %v1860
          %v1862 = vpop.f32.mrb[0].mxu0
          %v1863 = vpop.f32.mrb[0].mxu0
          %v1864 = vadd.f32 0.0, %v1863
          %v1865 = vpop.f32.mrb[0].mxu0
          %1866 = vdwg.mxu0
          %v1867 = vadd.f32 %v1754, %v1805
          %v1868 = vadd.f32 %v1755, %v1808
          %v1869 = vadd.f32 %v1756, %v1813
          %v1870 = vadd.f32 %v1757, %v1816
          %v1871 = vadd.f32 %v1758, %v1821
          %v1872 = vadd.f32 %v1759, %v1824
          %v1873 = vadd.f32 %v1760, %v1829
          %v1874 = vadd.f32 %v1761, %v1832
          %v1875 = vadd.f32 %v1762, %v1837
          %v1876 = vadd.f32 %v1763, %v1840
          %v1877 = vadd.f32 %v1764, %v1845
          %v1878 = vadd.f32 %v1765, %v1848
          %v1879 = vadd.f32 %v1766, %v1853
          %v1880 = vadd.f32 %v1767, %v1856
          %v1881 = vadd.f32 %v1768, %v1861
          %v1882 = vadd.f32 %v1769, %v1864
          %1883 = vst [vmem:[#allocation2] sm:$0xff] %v1867
          %1884 = vst [vmem:[#allocation2 + $0x8] sm:$0xff] %v1868
          %1885 = vst [vmem:[#allocation2 + $0x10] sm:$0xff] %v1869
          %1886 = vst [vmem:[#allocation2 + $0x18] sm:$0xff] %v1870
          %1887 = vst [vmem:[#allocation2 + $0x20] sm:$0xff] %v1871
          %1888 = vst [vmem:[#allocation2 + $0x28] sm:$0xff] %v1872
          %1889 = vst [vmem:[#allocation2 + $0x30] sm:$0xff] %v1873
          %1890 = vst [vmem:[#allocation2 + $0x38] sm:$0xff] %v1874
          %1891 = vst [vmem:[#allocation2 + $0x40] sm:$0xff] %v1875
          %1892 = vst [vmem:[#allocation2 + $0x48] sm:$0xff] %v1876
          %1893 = vst [vmem:[#allocation2 + $0x50] sm:$0xff] %v1877
          %1894 = vst [vmem:[#allocation2 + $0x58] sm:$0xff] %v1878
          %1895 = vst [vmem:[#allocation2 + $0x60] sm:$0xff] %v1879
          %1896 = vst [vmem:[#allocation2 + $0x68] sm:$0xff] %v1880
          %1897 = vst [vmem:[#allocation2 + $0x70] sm:$0xff] %v1881
          %1898 = vst [vmem:[#allocation2 + $0x78] sm:$0xff] %v1882
        $region88: #{tpu_custom_call.1} parent=67 // pred_fallthru
          _
        %p1899 = scmp.eq.s32.totalorder %s52, 3
        // Predicated region
        $region89: #{tpu_custom_call.1} parent=67 // pred_check
          %p1900 = pneg %p1899
        $region90: #{tpu_custom_call.1} parent=67 // pred_check_branch
          %1902 = sbr.rel (%p1900) target = $region92
        $region91: #{tpu_custom_call.1} parent=67 // pred_region
          %v1903 = vld [vmem:[#allocation2] sm:$0xff]
          %v1904 = vld [vmem:[#allocation2 + $0x8] sm:$0xff]
          %v1905 = vld [vmem:[#allocation2 + $0x10] sm:$0xff]
          %v1906 = vld [vmem:[#allocation2 + $0x18] sm:$0xff]
          %v1907 = vld [vmem:[#allocation2 + $0x20] sm:$0xff]
          %v1908 = vld [vmem:[#allocation2 + $0x28] sm:$0xff]
          %v1909 = vld [vmem:[#allocation2 + $0x30] sm:$0xff]
          %v1910 = vld [vmem:[#allocation2 + $0x38] sm:$0xff]
          %v1911 = vld [vmem:[#allocation2 + $0x40] sm:$0xff]
          %v1912 = vld [vmem:[#allocation2 + $0x48] sm:$0xff]
          %v1913 = vld [vmem:[#allocation2 + $0x50] sm:$0xff]
          %v1914 = vld [vmem:[#allocation2 + $0x58] sm:$0xff]
          %v1915 = vld [vmem:[#allocation2 + $0x60] sm:$0xff]
          %v1916 = vld [vmem:[#allocation2 + $0x68] sm:$0xff]
          %v1917 = vld [vmem:[#allocation2 + $0x70] sm:$0xff]
          %v1918 = vld [vmem:[#allocation2 + $0x78] sm:$0xff]
          %v1919 = vpack.c.bf16 %v1904, %v1903
          %v1920 = vpack.c.bf16 %v1906, %v1905
          %v1921 = vpack.c.bf16 %v1908, %v1907
          %v1922 = vpack.c.bf16 %v1910, %v1909
          %v1923 = vpack.c.bf16 %v1912, %v1911
          %v1924 = vpack.c.bf16 %v1914, %v1913
          %v1925 = vpack.c.bf16 %v1916, %v1915
          %v1926 = vpack.c.bf16 %v1918, %v1917
          %v1927 = vld [vmem:[#allocation11] sm:$0xf]
          %v1928 = vld [vmem:[#allocation11 + $0x4] sm:$0xf]
          %v1929 = vld [vmem:[#allocation11 + $0x8] sm:$0xf]
          %v1930 = vld [vmem:[#allocation11 + $0xc] sm:$0xf]
          %v1931 = vld [vmem:[#allocation11 + $0x10] sm:$0xf]
          %v1932 = vld [vmem:[#allocation11 + $0x14] sm:$0xf]
          %v1933 = vld [vmem:[#allocation11 + $0x18] sm:$0xf]
          %v1934 = vld [vmem:[#allocation11 + $0x1c] sm:$0xf]
          %v1935 = vld [vmem:[#allocation11 + $0x20] sm:$0xf]
          %v1936 = vld [vmem:[#allocation11 + $0x24] sm:$0xf]
          %v1937 = vld [vmem:[#allocation11 + $0x28] sm:$0xf]
          %v1938 = vld [vmem:[#allocation11 + $0x2c] sm:$0xf]
          %v1939 = vld [vmem:[#allocation11 + $0x30] sm:$0xf]
          %v1940 = vld [vmem:[#allocation11 + $0x34] sm:$0xf]
          %v1941 = vld [vmem:[#allocation11 + $0x38] sm:$0xf]
          %v1942 = vld [vmem:[#allocation11 + $0x3c] sm:$0xf]
          %v1943 = vld [vmem:[%s671] sm:$0xff]
          %v1944 = vld [vmem:[%s671 + $0x8] sm:$0xff]
          %v1945 = vld [vmem:[%s671 + $0x10] sm:$0xff]
          %v1946 = vld [vmem:[%s671 + $0x18] sm:$0xff]
          %v1947 = vld [vmem:[%s671 + $0x20] sm:$0xff]
          %v1948 = vld [vmem:[%s671 + $0x28] sm:$0xff]
          %v1949 = vld [vmem:[%s671 + $0x30] sm:$0xff]
          %v1950 = vld [vmem:[%s671 + $0x38] sm:$0xff]
          %v1951 = vld [vmem:[%s671 + $0x40] sm:$0xff]
          %v1952 = vld [vmem:[%s671 + $0x48] sm:$0xff]
          %v1953 = vld [vmem:[%s671 + $0x50] sm:$0xff]
          %v1954 = vld [vmem:[%s671 + $0x58] sm:$0xff]
          %v1955 = vld [vmem:[%s671 + $0x60] sm:$0xff]
          %v1956 = vld [vmem:[%s671 + $0x68] sm:$0xff]
          %v1957 = vld [vmem:[%s671 + $0x70] sm:$0xff]
          %v1958 = vld [vmem:[%s671 + $0x78] sm:$0xff]
          %v1959 = vld [vmem:[%s13] sm:$0x1]
          %1961 = vset.pattern.permute.xlu0 0
          %1962 = vperm.xlu0 %1961, %v1943
          %v1963 = vpop.permute.xlu0 %1962
          %1966 = vset.pattern.permute.xlu0 0
          %1967 = vperm.xlu0 %1966, %v1944
          %v1968 = vpop.permute.xlu0 %1967
          %1971 = vset.pattern.permute.xlu0 0
          %1972 = vperm.xlu0 %1971, %v1945
          %v1973 = vpop.permute.xlu0 %1972
          %1976 = vset.pattern.permute.xlu0 0
          %1977 = vperm.xlu0 %1976, %v1946
          %v1978 = vpop.permute.xlu0 %1977
          %1981 = vset.pattern.permute.xlu0 0
          %1982 = vperm.xlu0 %1981, %v1947
          %v1983 = vpop.permute.xlu0 %1982
          %1986 = vset.pattern.permute.xlu0 0
          %1987 = vperm.xlu0 %1986, %v1948
          %v1988 = vpop.permute.xlu0 %1987
          %1991 = vset.pattern.permute.xlu0 0
          %1992 = vperm.xlu0 %1991, %v1949
          %v1993 = vpop.permute.xlu0 %1992
          %1996 = vset.pattern.permute.xlu0 0
          %1997 = vperm.xlu0 %1996, %v1950
          %v1998 = vpop.permute.xlu0 %1997
          %2001 = vset.pattern.permute.xlu0 0
          %2002 = vperm.xlu0 %2001, %v1951
          %v2003 = vpop.permute.xlu0 %2002
          %2006 = vset.pattern.permute.xlu0 0
          %2007 = vperm.xlu0 %2006, %v1952
          %v2008 = vpop.permute.xlu0 %2007
          %2011 = vset.pattern.permute.xlu0 0
          %2012 = vperm.xlu0 %2011, %v1953
          %v2013 = vpop.permute.xlu0 %2012
          %2016 = vset.pattern.permute.xlu0 0
          %2017 = vperm.xlu0 %2016, %v1954
          %v2018 = vpop.permute.xlu0 %2017
          %2021 = vset.pattern.permute.xlu0 0
          %2022 = vperm.xlu0 %2021, %v1955
          %v2023 = vpop.permute.xlu0 %2022
          %2026 = vset.pattern.permute.xlu0 0
          %2027 = vperm.xlu0 %2026, %v1956
          %v2028 = vpop.permute.xlu0 %2027
          %2031 = vset.pattern.permute.xlu0 0
          %2032 = vperm.xlu0 %2031, %v1957
          %v2033 = vpop.permute.xlu0 %2032
          %2036 = vset.pattern.permute.xlu0 0
          %2037 = vperm.xlu0 %2036, %v1958
          %v2038 = vpop.permute.xlu0 %2037
          %v2041 = vlaneseq
          %v2042 = vshrl.u32 %v2041, 7
          %v2043 = vsub.s32 0, %v2042
          %v2044 = vrot.slane %v1959, %v2043
          %v2046 = vmul.f32 %v1963, %v2044
          %v2047 = vmul.f32 %v1968, %v2044
          %v2048 = vmul.f32 %v1973, %v2044
          %v2049 = vmul.f32 %v1978, %v2044
          %v2050 = vmul.f32 %v1983, %v2044
          %v2051 = vmul.f32 %v1988, %v2044
          %v2052 = vmul.f32 %v1993, %v2044
          %v2053 = vmul.f32 %v1998, %v2044
          %v2054 = vmul.f32 %v2003, %v2044
          %v2055 = vmul.f32 %v2008, %v2044
          %v2056 = vmul.f32 %v2013, %v2044
          %v2057 = vmul.f32 %v2018, %v2044
          %v2058 = vmul.f32 %v2023, %v2044
          %v2059 = vmul.f32 %v2028, %v2044
          %v2060 = vmul.f32 %v2033, %v2044
          %v2061 = vmul.f32 %v2038, %v2044
          %v2078 = vunpack.c.l.b16 %v1927
          %v2079 = vunpack.c.l.b16 %v1928
          %v2080 = vunpack.c.l.b16 %v1929
          %v2081 = vunpack.c.l.b16 %v1930
          %v2082 = vunpack.c.l.b16 %v1931
          %v2083 = vunpack.c.l.b16 %v1932
          %v2084 = vunpack.c.l.b16 %v1933
          %v2085 = vunpack.c.l.b16 %v1934
          %v2086 = vunpack.c.l.b16 %v1935
          %v2087 = vunpack.c.l.b16 %v1936
          %v2088 = vunpack.c.l.b16 %v1937
          %v2089 = vunpack.c.l.b16 %v1938
          %v2090 = vunpack.c.l.b16 %v1939
          %v2091 = vunpack.c.l.b16 %v1940
          %v2092 = vunpack.c.l.b16 %v1941
          %v2093 = vunpack.c.l.b16 %v1942
          %v2094 = vpack.c.b16 %v2079, %v2078
          %v2095 = vpack.c.b16 %v2081, %v2080
          %v2096 = vpack.c.b16 %v2083, %v2082
          %v2097 = vpack.c.b16 %v2085, %v2084
          %v2098 = vpack.c.b16 %v2087, %v2086
          %v2099 = vpack.c.b16 %v2089, %v2088
          %v2100 = vpack.c.b16 %v2091, %v2090
          %v2101 = vpack.c.b16 %v2093, %v2092
          %2110 = vmatprep.subr.bf16.mxu0 0
          %2111 = vmatpush1.bf16.msra.mxu0 %v2094
          %2112 = vmatprep.subr.bf16.mxu0 0
          %2113 = vmatpush1.bf16.msra.mxu0 %v2095
          %2114 = vmatprep.subr.bf16.mxu0 0
          %2115 = vmatpush1.bf16.msra.mxu0 %v2096
          %2116 = vmatprep.subr.bf16.mxu0 0
          %2117 = vmatpush1.bf16.msra.mxu0 %v2097
          %2118 = vmatprep.subr.bf16.mxu0 0
          %2119 = vmatpush1.bf16.msra.mxu0 %v2098
          %2120 = vmatprep.subr.bf16.mxu0 0
          %2121 = vmatpush1.bf16.msra.mxu0 %v2099
          %2122 = vmatprep.subr.bf16.mxu0 0
          %2123 = vmatpush1.bf16.msra.mxu0 %v2100
          %2124 = vmatprep.subr.bf16.mxu0 0
          %2125 = vmatpush1.bf16.msra.mxu0 %v2101
          %2126 = vmatprep.subr.bf16.mxu0 0
          %2127 = vmatpush1.bf16.msra.mxu0 0
          %2128 = vmatprep.subr.bf16.mxu0 0
          %2129 = vmatpush1.bf16.msra.mxu0 0
          %2130 = vmatprep.subr.bf16.mxu0 0
          %2131 = vmatpush1.bf16.msra.mxu0 0
          %2132 = vmatprep.subr.bf16.mxu0 0
          %2133 = vmatpush1.bf16.msra.mxu0 0
          %2134 = vmatprep.subr.bf16.mxu0 0
          %2135 = vmatpush1.bf16.msra.mxu0 0
          %2136 = vmatprep.subr.bf16.mxu0 0
          %2137 = vmatpush1.bf16.msra.mxu0 0
          %2138 = vmatprep.subr.bf16.mxu0 0
          %2139 = vmatpush1.bf16.msra.mxu0 0
          %2140 = vmatprep.subr.bf16.mxu0 0
          %2141 = vmatpush1.bf16.msra.mxu0 0
          %2142 = vmatprep.mubr.bf16.mxu0 0
          %2143 = vmatmul.mubr.bf16.gmra.mrb[0].mxu0 %v1919
          %v2144 = vpop.f32.mrb[0].mxu0
          %v2145 = vadd.f32 %v2046, %v2144
          %v2146 = vpop.f32.mrb[0].mxu0
          %v2147 = vpop.f32.mrb[0].mxu0
          %v2148 = vadd.f32 %v2047, %v2147
          %v2149 = vpop.f32.mrb[0].mxu0
          %2150 = vmatprep.mubr.bf16.mxu0 0
          %2151 = vmatmul.mubr.bf16.gmra.mrb[0].mxu0 %v1920
          %v2152 = vpop.f32.mrb[0].mxu0
          %v2153 = vadd.f32 %v2048, %v2152
          %v2154 = vpop.f32.mrb[0].mxu0
          %v2155 = vpop.f32.mrb[0].mxu0
          %v2156 = vadd.f32 %v2049, %v2155
          %v2157 = vpop.f32.mrb[0].mxu0
          %2158 = vmatprep.mubr.bf16.mxu0 0
          %2159 = vmatmul.mubr.bf16.gmra.mrb[0].mxu0 %v1921
          %v2160 = vpop.f32.mrb[0].mxu0
          %v2161 = vadd.f32 %v2050, %v2160
          %v2162 = vpop.f32.mrb[0].mxu0
          %v2163 = vpop.f32.mrb[0].mxu0
          %v2164 = vadd.f32 %v2051, %v2163
          %v2165 = vpop.f32.mrb[0].mxu0
          %2166 = vmatprep.mubr.bf16.mxu0 0
          %2167 = vmatmul.mubr.bf16.gmra.mrb[0].mxu0 %v1922
          %v2168 = vpop.f32.mrb[0].mxu0
          %v2169 = vadd.f32 %v2052, %v2168
          %v2170 = vpop.f32.mrb[0].mxu0
          %v2171 = vpop.f32.mrb[0].mxu0
          %v2172 = vadd.f32 %v2053, %v2171
          %v2173 = vpop.f32.mrb[0].mxu0
          %2174 = vmatprep.mubr.bf16.mxu0 0
          %2175 = vmatmul.mubr.bf16.gmra.mrb[0].mxu0 %v1923
          %v2176 = vpop.f32.mrb[0].mxu0
          %v2177 = vadd.f32 %v2054, %v2176
          %v2178 = vpop.f32.mrb[0].mxu0
          %v2179 = vpop.f32.mrb[0].mxu0
          %v2180 = vadd.f32 %v2055, %v2179
          %v2181 = vpop.f32.mrb[0].mxu0
          %2182 = vmatprep.mubr.bf16.mxu0 0
          %2183 = vmatmul.mubr.bf16.gmra.mrb[0].mxu0 %v1924
          %v2184 = vpop.f32.mrb[0].mxu0
          %v2185 = vadd.f32 %v2056, %v2184
          %v2186 = vpop.f32.mrb[0].mxu0
          %v2187 = vpop.f32.mrb[0].mxu0
          %v2188 = vadd.f32 %v2057, %v2187
          %v2189 = vpop.f32.mrb[0].mxu0
          %2190 = vmatprep.mubr.bf16.mxu0 0
          %2191 = vmatmul.mubr.bf16.gmra.mrb[0].mxu0 %v1925
          %v2192 = vpop.f32.mrb[0].mxu0
          %v2193 = vadd.f32 %v2058, %v2192
          %v2194 = vpop.f32.mrb[0].mxu0
          %v2195 = vpop.f32.mrb[0].mxu0
          %v2196 = vadd.f32 %v2059, %v2195
          %v2197 = vpop.f32.mrb[0].mxu0
          %2198 = vmatprep.mubr.bf16.mxu0 0
          %2199 = vmatmul.mubr.bf16.gmra.mrb[0].mxu0 %v1926
          %v2200 = vpop.f32.mrb[0].mxu0
          %v2201 = vadd.f32 %v2060, %v2200
          %v2202 = vpop.f32.mrb[0].mxu0
          %v2203 = vpop.f32.mrb[0].mxu0
          %v2204 = vadd.f32 %v2061, %v2203
          %v2205 = vpop.f32.mrb[0].mxu0
          %2206 = vdwg.mxu0
          %v2207 = vpack.c.bf16 %v2148, %v2145
          %v2208 = vpack.c.bf16 %v2156, %v2153
          %v2209 = vpack.c.bf16 %v2164, %v2161
          %v2210 = vpack.c.bf16 %v2172, %v2169
          %v2211 = vpack.c.bf16 %v2180, %v2177
          %v2212 = vpack.c.bf16 %v2188, %v2185
          %v2213 = vpack.c.bf16 %v2196, %v2193
          %v2214 = vpack.c.bf16 %v2204, %v2201
          %v2223 = vunpack.c.l.b16 %v2207
          %v2224 = vunpack.c.h.b16 %v2207
          %v2225 = vunpack.c.l.b16 %v2208
          %v2226 = vunpack.c.h.b16 %v2208
          %v2227 = vunpack.c.l.b16 %v2209
          %v2228 = vunpack.c.h.b16 %v2209
          %v2229 = vunpack.c.l.b16 %v2210
          %v2230 = vunpack.c.h.b16 %v2210
          %v2231 = vunpack.c.l.b16 %v2211
          %v2232 = vunpack.c.h.b16 %v2211
          %v2233 = vunpack.c.l.b16 %v2212
          %v2234 = vunpack.c.h.b16 %v2212
          %v2235 = vunpack.c.l.b16 %v2213
          %v2236 = vunpack.c.h.b16 %v2213
          %v2237 = vunpack.c.l.b16 %v2214
          %v2238 = vunpack.c.h.b16 %v2214
          %v2239 = vpack.c.b16 %v2223, %v2223
          %v2240 = vpack.c.b16 %v2224, %v2224
          %v2241 = vpack.c.b16 %v2225, %v2225
          %v2242 = vpack.c.b16 %v2226, %v2226
          %v2243 = vpack.c.b16 %v2227, %v2227
          %v2244 = vpack.c.b16 %v2228, %v2228
          %v2245 = vpack.c.b16 %v2229, %v2229
          %v2246 = vpack.c.b16 %v2230, %v2230
          %v2247 = vpack.c.b16 %v2231, %v2231
          %v2248 = vpack.c.b16 %v2232, %v2232
          %v2249 = vpack.c.b16 %v2233, %v2233
          %v2250 = vpack.c.b16 %v2234, %v2234
          %v2251 = vpack.c.b16 %v2235, %v2235
          %v2252 = vpack.c.b16 %v2236, %v2236
          %v2253 = vpack.c.b16 %v2237, %v2237
          %v2254 = vpack.c.b16 %v2238, %v2238
          %2271 = vst [vmem:[%s631] sm:$0xf] %v2239
          %2272 = vst [vmem:[%s631 + $0x4] sm:$0xf] %v2240
          %2273 = vst [vmem:[%s631 + $0x8] sm:$0xf] %v2241
          %2274 = vst [vmem:[%s631 + $0xc] sm:$0xf] %v2242
          %2275 = vst [vmem:[%s631 + $0x10] sm:$0xf] %v2243
          %2276 = vst [vmem:[%s631 + $0x14] sm:$0xf] %v2244
          %2277 = vst [vmem:[%s631 + $0x18] sm:$0xf] %v2245
          %2278 = vst [vmem:[%s631 + $0x1c] sm:$0xf] %v2246
          %2279 = vst [vmem:[%s631 + $0x20] sm:$0xf] %v2247
          %2280 = vst [vmem:[%s631 + $0x24] sm:$0xf] %v2248
          %2281 = vst [vmem:[%s631 + $0x28] sm:$0xf] %v2249
          %2282 = vst [vmem:[%s631 + $0x2c] sm:$0xf] %v2250
          %2283 = vst [vmem:[%s631 + $0x30] sm:$0xf] %v2251
          %2284 = vst [vmem:[%s631 + $0x34] sm:$0xf] %v2252
          %2285 = vst [vmem:[%s631 + $0x38] sm:$0xf] %v2253
          %2286 = vst [vmem:[%s631 + $0x3c] sm:$0xf] %v2254
        $region92: #{tpu_custom_call.1} parent=67 // pred_fallthru
          _
        %s2287 = sand.u32 %s371, 1
        %s2288 = scalar_lea.sflag [#allocation8], %s2287
        %s2289 = sand.u32 %s371, 1
        %s2290 = smul.addr %s2289, 64
        %s2291 = scalar_lea.vmem [#allocation12], %s2290
        %s2292 = sand.u32 %s397, 1
        %s2293 = scalar_lea.sflag [#allocation14], %s2292
        %s2294 = sand.u32 %s397, 1
        %s2295 = smul.addr %s2294, 64
        %s2296 = scalar_lea.vmem [#allocation13], %s2295
        // Predicated region
        $region93: #{tpu_custom_call.1} parent=67 // pred_check
          %p2297 = pneg %p381
        $region94: #{tpu_custom_call.1} parent=67 // pred_check_branch
          %2299 = sbr.rel (%p2297) target = $region96
        $region95: #{tpu_custom_call.1} parent=67 // pred_region
          %s2300 = smul.u32 16, %s51
          %s2302 = ssub.s32 1024, 1024
          %2303 = vsyncadd %s2288, %s2302
          %s2304 = smul.addr %s2300, 64
          %s2305 = scalar_lea.hbm %s14, %s2304
          %s2306 = sshll.u32 %s2291, 4
          %s2307 = int_to_ptr.vmem [resolvable:$true] %s2306
          %2312 = dma.vmem_to_hbm [thread:$0]  %s2307, 1024, %s2305, %s2288, 64, 64, 4
        $region96: #{tpu_custom_call.1} parent=67 // pred_fallthru
          _
        // Predicated region
        $region97: #{tpu_custom_call.1} parent=67 // pred_check
          %p2313 = pneg %p407
        $region98: #{tpu_custom_call.1} parent=67 // pred_check_branch
          %2315 = sbr.rel (%p2313) target = $region100
        $region99: #{tpu_custom_call.1} parent=67 // pred_region
          %s2316 = smul.u32 16, %s51
          %s2318 = ssub.s32 1024, 1024
          %2319 = vsyncadd %s2293, %s2318
          %s2320 = smul.addr %s2316, 64
          %s2321 = scalar_lea.hbm %s15, %s2320
          %s2322 = sshll.u32 %s2296, 4
          %s2323 = int_to_ptr.vmem [resolvable:$true] %s2322
          %2328 = dma.vmem_to_hbm [thread:$0]  %s2323, 1024, %s2321, %s2293, 64, 64, 4
        $region100: #{tpu_custom_call.1} parent=67 // pred_fallthru
          _
      $region68: #{tpu_custom_call.1} parent=5 // pred_fallthru
        _
      %p2329 = scmp.le.s32.totalorder 2, %s42
      // Predicated region
      $region101: #{tpu_custom_call.1} parent=5 // pred_check
        %p2330 = pneg %p2329
      $region102: #{tpu_custom_call.1} parent=5 // pred_check_branch
        %2332 = sbr.rel (%p2330) target = $region104
      $region103: #{tpu_custom_call.1} parent=5 // pred_region
        %s2333 = ssub.s32 %s42, 2
        // Predicated region
        $region105: #{tpu_custom_call.1} parent=103 // pred_check
          %p2334 = pneg %p387
        $region106: #{tpu_custom_call.1} parent=103 // pred_check_branch
          %2336 = sbr.rel (%p2334) target = $region108
        $region107: #{tpu_custom_call.1} parent=103 // pred_region
          %s2337 = sand.u32 %s372, 1
          %s2338 = scalar_lea.sflag [#allocation8], %s2337
          %s2339 = sand.u32 %s372, 1
          %s2340 = smul.addr %s2339, 64
          %s2341 = scalar_lea.vmem [#allocation12], %s2340
          %2342 = dma.done %s2338, 1024
        $region108: #{tpu_custom_call.1} parent=103 // pred_fallthru
          _
        // Predicated region
        $region109: #{tpu_custom_call.1} parent=103 // pred_check
          %p2343 = pneg %p413
        $region110: #{tpu_custom_call.1} parent=103 // pred_check_branch
          %2345 = sbr.rel (%p2343) target = $region112
        $region111: #{tpu_custom_call.1} parent=103 // pred_region
          %s2346 = sand.u32 %s398, 1
          %s2347 = scalar_lea.sflag [#allocation14], %s2346
          %s2348 = sand.u32 %s398, 1
          %s2349 = smul.addr %s2348, 64
          %s2350 = scalar_lea.vmem [#allocation13], %s2349
          %2351 = dma.done %s2347, 1024
        $region112: #{tpu_custom_call.1} parent=103 // pred_fallthru
          _
      $region104: #{tpu_custom_call.1} parent=5 // pred_fallthru
        _
    $region6: #{tpu_custom_call.1} parent=1 // loop_footer
      %s46 = sadd.s32 1, %s42
    $region7: #{tpu_custom_call.1} parent=1 // loop_footer_branch
      %41 = sbr.rel target = $region3
    $region8: #{tpu_custom_call.1} parent=1 // loop_exit
      _
    %2352 = vsyncpa [#allocation7], 1
    %s2353 = scalar_lea.sflag [#allocation7], 1
    %2354 = vsyncpa %s2353, 1
    %2355 = vsyncpa [#allocation10], 1
    %2356 = vsyncpa [#allocation8], 1
    %s2357 = scalar_lea.sflag [#allocation8], 1
    %2358 = vsyncpa %s2357, 1
    %2359 = vsyncpa [#allocation14], 1
    %s2360 = scalar_lea.sflag [#allocation14], 1
    %2361 = vsyncpa %s2360, 1

</llo_original>
